<compile_context>
chip_gen: v7x
topology: tpu7x:2x2x1
jax: 0.10.0
libtpu: 0.0.40
codegen_flags: <defaults>
</compile_context>

<pallas_src>
import functools

import jax
import jax.numpy as jnp
from jax.experimental import pallas as pl
from jax.experimental.pallas import tpu as pltpu

# Model dims (PyTorch spec) and lane-aligned padded dims used on-device.
D_IN, H1, H2, H3, D_OUT = 2, 150, 50, 50, 2
H1P, H2P, H3P = 256, 128, 128          # multiples of 128 -> no ragged MXU passes / dead lanes


# ---------------------------------------------------------------------------
# Kernels
# ---------------------------------------------------------------------------
def _mlp_pair(ya, yb, w1a, w1b, b1, w2_ref, b2, w3_ref, b3, w4_ref, b4):
    """One ODEFunc evaluation on TWO independent row sub-tiles.

    The a/b chains have no data dependence, so the LLO scheduler can overlap
    sub-tile A's tanh (EUP) with sub-tile B's matmul (MXU).  Layer 1 has K=2 and
    runs on the VPU as broadcast-FMAs; layers 2-4 run bf16 on the MXU with f32
    accumulation.  Returns f32 (half, D_OUT) outputs for both sub-tiles.
    """
    cdt = w2_ref.dtype  # compute dtype for MXU operands (bf16 by default)

    h1a = jnp.tanh(ya[:, 0:1] * w1a + ya[:, 1:2] * w1b + b1).astype(cdt)   # VPU + EUP
    h1b = jnp.tanh(yb[:, 0:1] * w1a + yb[:, 1:2] * w1b + b1).astype(cdt)

    w2 = w2_ref[...]
    s2a = jnp.dot(h1a, w2, preferred_element_type=jnp.float32) + b2        # MXU (bf16 in, f32 acc)
    s2b = jnp.dot(h1b, w2, preferred_element_type=jnp.float32) + b2
    h2a = jnp.tanh(s2a).astype(cdt)
    h2b = jnp.tanh(s2b).astype(cdt)

    w3 = w3_ref[...]
    s3a = jnp.dot(h2a, w3, preferred_element_type=jnp.float32) + b3
    s3b = jnp.dot(h2b, w3, preferred_element_type=jnp.float32) + b3
    h3a = jnp.tanh(s3a).astype(cdt)
    h3b = jnp.tanh(s3b).astype(cdt)
    # TODO(synk): if a bundle dump shows the single EUP slot saturated, swap jnp.tanh for a
    # VPU Pade approximation (x*(27+x^2)/(27+9x^2) with pl.reciprocal(approx=True)).

    w4 = w4_ref[...]
    oa = jnp.dot(h3a, w4, preferred_element_type=jnp.float32) + b4
    ob = jnp.dot(h3b, w4, preferred_element_type=jnp.float32) + b4
    return oa, ob


def odefunc_fwd_kernel(y_ref, w1_ref, b1_ref, w2_ref, b2_ref,
                       w3_ref, b3_ref, w4_ref, b4_ref, o_ref, *, half):
    """Single evaluation of dy/dt = net(y) for one batch tile (two interleaved sub-tiles)."""
    ya = y_ref[pl.ds(0, half), :]
    yb = y_ref[pl.ds(half, half), :]
    oa, ob = _mlp_pair(
        ya, yb,
        w1_ref[0:1, :], w1_ref[1:2, :], b1_ref[...],
        w2_ref, b2_ref[...],
        w3_ref, b3_ref[...],
        w4_ref, b4_ref[...],
    )
    o_ref[pl.ds(0, half), :] = oa
    o_ref[pl.ds(half, half), :] = ob


def odefunc_euler_kernel(dt_ref, y_ref, w1_ref, b1_ref, w2_ref, b2_ref,
                         w3_ref, b3_ref, w4_ref, b4_ref, o_ref, *, num_steps, half):
    """Fused fixed-step Euler integration: the full solver loop runs in-kernel,
    weights stay VMEM-resident, only y0 in / y_final out cross HBM.
    State and the y + dt*dy update stay f32; only MXU operands are bf16."""
    dt = dt_ref[0, 0]                      # runtime scalar from SMEM (no recompile per dt)

    # Hoist small loop-invariant loads (w1 rows + biases); w2/w3/w4 stay as VMEM refs
    # inside the loop (too large to pin in vregs).
    w1a = w1_ref[0:1, :]
    w1b = w1_ref[1:2, :]
    b1 = b1_ref[...]
    b2 = b2_ref[...]
    b3 = b3_ref[...]
    b4 = b4_ref[...]

    def step(_, carry):
        ya, yb = carry
        da, db = _mlp_pair(ya, yb, w1a, w1b, b1, w2_ref, b2, w3_ref, b3, w4_ref, b4)
        return ya + dt * da, yb + dt * db

    ya0 = y_ref[pl.ds(0, half), :]
    yb0 = y_ref[pl.ds(half, half), :]
    ya, yb = jax.lax.fori_loop(0, num_steps, step, (ya0, yb0), unroll=2)
    o_ref[pl.ds(0, half), :] = ya
    o_ref[pl.ds(half, half), :] = yb


# ---------------------------------------------------------------------------
# Wrappers
# ---------------------------------------------------------------------------
def _pad2(x, rows, cols):
    return jnp.pad(x, ((0, rows - x.shape[0]), (0, cols - x.shape[1])))


def prepare_params(params, compute_dtype=jnp.bfloat16):
    """Zero-pad PyTorch-layout params to lane-aligned shapes (once, off the hot path).

    Padding is exact: padded weight columns/rows are zero and tanh(0)=0, so padded hidden
    units contribute nothing downstream.  w2/w3/w4 are stored in `compute_dtype` (bf16 by
    default -> native-rate MXU); w1 and all biases stay f32 (VPU path / f32 accumulation)."""
    w1, b1, w2, b2, w3, b3, w4, b4 = params
    return (
        _pad2(w1, D_IN, H1P), _pad2(b1, 1, H1P),
        _pad2(w2, H1P, H2P).astype(compute_dtype), _pad2(b2, 1, H2P),
        _pad2(w3, H2P, H3P).astype(compute_dtype), _pad2(b3, 1, H3P),
        _pad2(w4, H3P, D_OUT).astype(compute_dtype), b4,
    )


def _pick_tb(batch):
    """Batch tile: 128 rows normally; 64 when that would give a single grid tile, so the
    'parallel' axis has >= 2 tiles and both v7x TensorCores get work on small batches."""
    return 64 if batch <= 128 else 128


def _specs(tb):
    y_spec = pl.BlockSpec((tb, D_IN), lambda i: (i, 0))
    o_spec = pl.BlockSpec((tb, D_OUT), lambda i: (i, 0))
    const = lambda shape: pl.BlockSpec(shape, lambda i: (0, 0))   # weights: VMEM-resident block
    w_specs = [
        const((D_IN, H1P)), const((1, H1P)),
        const((H1P, H2P)), const((1, H2P)),
        const((H2P, H3P)), const((1, H3P)),
        const((H3P, D_OUT)), const((1, D_OUT)),
    ]
    return y_spec, w_specs, o_spec


def _cost(batch_padded, num_evals, padded_params):
    per_row_flops = 2 * (D_IN * H1P + H1P * H2P + H2P * H3P + H3P * D_OUT)
    per_row_trans = H1P + H2P + H3P
    weight_bytes = sum(int(p.size) * jnp.dtype(p.dtype).itemsize for p in padded_params)
    io_bytes = 4 * batch_padded * (D_IN + D_OUT)
    return pl.CostEstimate(
        flops=batch_padded * per_row_flops * num_evals,
        transcendentals=batch_padded * per_row_trans * num_evals,
        bytes_accessed=weight_bytes + io_bytes,
    )


@jax.jit
def odefunc_forward(t, y, padded_params):
    """dy/dt = net(y). `t` is ignored (matches ODEFunc.forward)."""
    del t
    batch = y.shape[0]
    tb = _pick_tb(batch)
    bp = ((batch + tb - 1) // tb) * tb
    y_p = jnp.pad(y, ((0, bp - batch), (0, 0)))
    y_spec, w_specs, o_spec = _specs(tb)
    kernel = functools.partial(odefunc_fwd_kernel, half=tb // 2)
    # TODO(synk): for very large batches, loop several 128-row slabs per grid step here to
    # amortize the ~0.35us/grid-step pipeline overhead of this tiny MLP.
    out = pl.pallas_call(
        kernel,
        out_shape=jax.ShapeDtypeStruct((bp, D_OUT), jnp.float32),
        grid=(bp // tb,),
        in_specs=[y_spec] + w_specs,
        out_specs=o_spec,
        compiler_params=pltpu.CompilerParams(dimension_semantics=("parallel",)),
        cost_estimate=_cost(bp, 1, padded_params),
    )(y_p, *padded_params)
    return out[:batch]


@functools.partial(jax.jit, static_argnames=("num_steps",))
def odefunc_integrate(y0, padded_params, dt, *, num_steps):
    """Fixed-step Euler integration of dy/dt = net(y); the step loop is fused into one
    pallas_call (one launch + one weight DMA for all steps).  dt is a runtime scalar."""
    batch = y0.shape[0]
    tb = _pick_tb(batch)
    bp = ((batch + tb - 1) // tb) * tb
    y_p = jnp.pad(y0, ((0, bp - batch), (0, 0)))
    dt_arr = jnp.asarray(dt, dtype=jnp.float32).reshape(1, 1)
    y_spec, w_specs, o_spec = _specs(tb)
    dt_spec = pl.BlockSpec(memory_space=pltpu.MemorySpace.SMEM)
    kernel = functools.partial(odefunc_euler_kernel, num_steps=num_steps, half=tb // 2)
    # TODO(synk): higher-order solvers (RK4/adaptive) would follow the same fused pattern.
    out = pl.pallas_call(
        kernel,
        out_shape=jax.ShapeDtypeStruct((bp, D_OUT), jnp.float32),
        grid=(bp // tb,),
        in_specs=[dt_spec, y_spec] + w_specs,
        out_specs=o_spec,
        compiler_params=pltpu.CompilerParams(dimension_semantics=("parallel",)),
        cost_estimate=_cost(bp, num_steps, padded_params),
    )(dt_arr, y_p, *padded_params)
    return out[:batch]


# ---------------------------------------------------------------------------
# Init + reference
# ---------------------------------------------------------------------------
def init_params(key):
    """Deterministic init matching the PyTorch module: W ~ Normal(0, 0.1), b = 0.
    Weights stored as (in_features, out_features) so the kernel does y @ W + b."""
    sizes = [(D_IN, H1), (H1, H2), (H2, H3), (H3, D_OUT)]
    keys = jax.random.split(key, len(sizes))
    params = []
    for k, (fan_in, fan_out) in zip(keys, sizes):
        w = 0.1 * jax.random.normal(k, (fan_in, fan_out), dtype=jnp.float32)
        b = jnp.zeros((1, fan_out), dtype=jnp.float32)
        params.extend([w, b])
    return tuple(params)


def odefunc_reference(t, y, params):
    del t
    w1, b1, w2, b2, w3, b3, w4, b4 = params
    h = jnp.tanh(y @ w1 + b1)
    h = jnp.tanh(h @ w2 + b2)
    h = jnp.tanh(h @ w3 + b3)
    return h @ w4 + b4


def euler_reference(y0, params, *, num_steps, dt):
    y = y0
    for _ in range(num_steps):
        y = y + dt * odefunc_reference(0.0, y, params)
    return y


# ---------------------------------------------------------------------------
if __name__ == "__main__":
    key = jax.random.PRNGKey(0)
    k_params, k_y = jax.random.split(key)

    params = init_params(k_params)
    padded_params = prepare_params(params)   # bf16 MXU operands, f32 biases/state

    # Two 128-row tiles -> the "parallel" grid has 2 entries (both v7x TCs busy).
    batch = 256
    y = jax.random.normal(k_y, (batch, D_IN), dtype=jnp.float32)
    t = jnp.float32(0.0)  # unused, kept for API parity with ODEFunc.forward(t, y)

    # Single forward evaluation vs. pure-JAX f32 reference (bf16 operands -> ~1e-3 error).
    out = jax.block_until_ready(odefunc_forward(t, y, padded_params))
    ref = odefunc_reference(t, y, params)
    assert out.shape == (batch, D_OUT)
    assert jnp.allclose(out, ref, atol=2e-2, rtol=2e-2), "forward mismatch vs reference"

    # Non-tile-multiple / small batch also works (padded internally, 64-row tile picked).
    out_small = jax.block_until_ready(odefunc_forward(t, y[:8], padded_params))
    assert jnp.allclose(out_small, ref[:8], atol=2e-2, rtol=2e-2), "small-batch mismatch"

    # Fused multi-step Euler integration (solver loop inside the kernel, runtime dt).
    num_steps, dt = 64, 1e-2
    traj = jax.block_until_ready(
        odefunc_integrate(y, padded_params, dt, num_steps=num_steps))
    traj_ref = euler_reference(y, params, num_steps=num_steps, dt=dt)
    assert traj.shape == (batch, D_OUT)
    assert jnp.allclose(traj, traj_ref, atol=2e-2, rtol=2e-2), "fused Euler mismatch"

    print("KERNEL_OK")
</pallas_src>

<mosaic_0001>
module attributes {stable_mosaic.version = 11 : i64} {
  func.func @odefunc_fwd_kernel(%arg0: i32, %arg1: memref<128x2xf32, #tpu.memory_space<vmem>>, %arg2: memref<2x256xf32, #tpu.memory_space<vmem>>, %arg3: memref<1x256xf32, #tpu.memory_space<vmem>>, %arg4: memref<256x128xbf16, #tpu.memory_space<vmem>>, %arg5: memref<1x128xf32, #tpu.memory_space<vmem>>, %arg6: memref<128x128xbf16, #tpu.memory_space<vmem>>, %arg7: memref<1x128xf32, #tpu.memory_space<vmem>>, %arg8: memref<128x2xbf16, #tpu.memory_space<vmem>>, %arg9: memref<1x2xf32, #tpu.memory_space<vmem>>, %arg10: memref<128x2xf32, #tpu.memory_space<vmem>>) attributes {dimension_semantics = [#tpu.dimension_semantics<parallel>], iteration_bounds = array<i64: 2>, scalar_prefetch = 0 : i64, scratch_operands = 0 : i64, tpu.core_type = #tpu.core_type<tc>, window_params = [{transform_indices = @transform_0, window_bounds = array<i64: 128, 2>}, {pipeline_mode = #tpu.pipeline_mode<synchronous>, transform_indices = @transform_1, window_bounds = array<i64: 2, 256>}, {pipeline_mode = #tpu.pipeline_mode<synchronous>, transform_indices = @transform_2, window_bounds = array<i64: 1, 256>}, {pipeline_mode = #tpu.pipeline_mode<synchronous>, transform_indices = @transform_3, window_bounds = array<i64: 256, 128>}, {pipeline_mode = #tpu.pipeline_mode<synchronous>, transform_indices = @transform_4, window_bounds = array<i64: 1, 128>}, {pipeline_mode = #tpu.pipeline_mode<synchronous>, transform_indices = @transform_5, window_bounds = array<i64: 128, 128>}, {pipeline_mode = #tpu.pipeline_mode<synchronous>, transform_indices = @transform_6, window_bounds = array<i64: 1, 128>}, {pipeline_mode = #tpu.pipeline_mode<synchronous>, transform_indices = @transform_7, window_bounds = array<i64: 128, 2>}, {pipeline_mode = #tpu.pipeline_mode<synchronous>, transform_indices = @transform_8, window_bounds = array<i64: 1, 2>}, {transform_indices = @transform_9, window_bounds = array<i64: 128, 2>}]} {
    %c0 = arith.constant 0 : index
    %c0_0 = arith.constant 0 : index
    %0 = vector.load %arg1[%c0, %c0_0] : memref<128x2xf32, #tpu.memory_space<vmem>>, vector<64x2xf32>
    %c64 = arith.constant 64 : index
    %c0_1 = arith.constant 0 : index
    %1 = vector.load %arg1[%c64, %c0_1] : memref<128x2xf32, #tpu.memory_space<vmem>>, vector<64x2xf32>
    %c0_2 = arith.constant 0 : index
    %c0_3 = arith.constant 0 : index
    %2 = vector.load %arg2[%c0_2, %c0_3] : memref<2x256xf32, #tpu.memory_space<vmem>>, vector<1x256xf32>
    %c1 = arith.constant 1 : index
    %c0_4 = arith.constant 0 : index
    %3 = vector.load %arg2[%c1, %c0_4] : memref<2x256xf32, #tpu.memory_space<vmem>>, vector<1x256xf32>
    %c0_5 = arith.constant 0 : index
    %c0_6 = arith.constant 0 : index
    %4 = vector.load %arg3[%c0_5, %c0_6] : memref<1x256xf32, #tpu.memory_space<vmem>>, vector<1x256xf32>
    %c0_7 = arith.constant 0 : index
    %c0_8 = arith.constant 0 : index
    %5 = vector.load %arg5[%c0_7, %c0_8] : memref<1x128xf32, #tpu.memory_space<vmem>>, vector<1x128xf32>
    %c0_9 = arith.constant 0 : index
    %c0_10 = arith.constant 0 : index
    %6 = vector.load %arg7[%c0_9, %c0_10] : memref<1x128xf32, #tpu.memory_space<vmem>>, vector<1x128xf32>
    %c0_11 = arith.constant 0 : index
    %c0_12 = arith.constant 0 : index
    %7 = vector.load %arg9[%c0_11, %c0_12] : memref<1x2xf32, #tpu.memory_space<vmem>>, vector<1x2xf32>
    %8 = vector.extract_strided_slice %0 {offsets = [0, 0], sizes = [64, 1], strides = [1, 1]} : vector<64x2xf32> to vector<64x1xf32>
    %9 = vector.broadcast %8 : vector<64x1xf32> to vector<64x256xf32>
    %10 = vector.broadcast %2 : vector<1x256xf32> to vector<64x256xf32>
    %11 = arith.mulf %9, %10 : vector<64x256xf32>
    %12 = vector.extract_strided_slice %0 {offsets = [0, 1], sizes = [64, 1], strides = [1, 1]} : vector<64x2xf32> to vector<64x1xf32>
    %13 = vector.broadcast %12 : vector<64x1xf32> to vector<64x256xf32>
    %14 = vector.broadcast %3 : vector<1x256xf32> to vector<64x256xf32>
    %15 = arith.mulf %13, %14 : vector<64x256xf32>
    %16 = arith.addf %11, %15 : vector<64x256xf32>
    %17 = vector.broadcast %4 : vector<1x256xf32> to vector<64x256xf32>
    %18 = arith.addf %16, %17 : vector<64x256xf32>
    %19 = math.tanh %18 : vector<64x256xf32>
    %20 = arith.truncf %19 : vector<64x256xf32> to vector<64x256xbf16>
    %21 = vector.extract_strided_slice %1 {offsets = [0, 0], sizes = [64, 1], strides = [1, 1]} : vector<64x2xf32> to vector<64x1xf32>
    %22 = vector.broadcast %21 : vector<64x1xf32> to vector<64x256xf32>
    %23 = vector.broadcast %2 : vector<1x256xf32> to vector<64x256xf32>
    %24 = arith.mulf %22, %23 : vector<64x256xf32>
    %25 = vector.extract_strided_slice %1 {offsets = [0, 1], sizes = [64, 1], strides = [1, 1]} : vector<64x2xf32> to vector<64x1xf32>
    %26 = vector.broadcast %25 : vector<64x1xf32> to vector<64x256xf32>
    %27 = vector.broadcast %3 : vector<1x256xf32> to vector<64x256xf32>
    %28 = arith.mulf %26, %27 : vector<64x256xf32>
    %29 = arith.addf %24, %28 : vector<64x256xf32>
    %30 = vector.broadcast %4 : vector<1x256xf32> to vector<64x256xf32>
    %31 = arith.addf %29, %30 : vector<64x256xf32>
    %32 = math.tanh %31 : vector<64x256xf32>
    %33 = arith.truncf %32 : vector<64x256xf32> to vector<64x256xbf16>
    %c0_13 = arith.constant 0 : index
    %c0_14 = arith.constant 0 : index
    %34 = vector.load %arg4[%c0_13, %c0_14] : memref<256x128xbf16, #tpu.memory_space<vmem>>, vector<256x128xbf16>
    %cst = arith.constant dense<0.000000e+00> : vector<64x128xf32>
    %35 = tpu.matmul %20, %34, %cst {dimension_numbers = #tpu.dot_dimension_numbers<[1], [0], [0], [1], [0, 0, 1, 1], [], []>} : vector<64x256xbf16>, vector<256x128xbf16>, vector<64x128xf32> -> vector<64x128xf32>
    %36 = vector.broadcast %5 : vector<1x128xf32> to vector<64x128xf32>
    %37 = arith.addf %35, %36 : vector<64x128xf32>
    %cst_15 = arith.constant dense<0.000000e+00> : vector<64x128xf32>
    %38 = tpu.matmul %33, %34, %cst_15 {dimension_numbers = #tpu.dot_dimension_numbers<[1], [0], [0], [1], [0, 0, 1, 1], [], []>} : vector<64x256xbf16>, vector<256x128xbf16>, vector<64x128xf32> -> vector<64x128xf32>
    %39 = vector.broadcast %5 : vector<1x128xf32> to vector<64x128xf32>
    %40 = arith.addf %38, %39 : vector<64x128xf32>
    %41 = math.tanh %37 : vector<64x128xf32>
    %42 = arith.truncf %41 : vector<64x128xf32> to vector<64x128xbf16>
    %43 = math.tanh %40 : vector<64x128xf32>
    %44 = arith.truncf %43 : vector<64x128xf32> to vector<64x128xbf16>
    %c0_16 = arith.constant 0 : index
    %c0_17 = arith.constant 0 : index
    %45 = vector.load %arg6[%c0_16, %c0_17] : memref<128x128xbf16, #tpu.memory_space<vmem>>, vector<128x128xbf16>
    %cst_18 = arith.constant dense<0.000000e+00> : vector<64x128xf32>
    %46 = tpu.matmul %42, %45, %cst_18 {dimension_numbers = #tpu.dot_dimension_numbers<[1], [0], [0], [1], [0, 0, 1, 1], [], []>} : vector<64x128xbf16>, vector<128x128xbf16>, vector<64x128xf32> -> vector<64x128xf32>
    %47 = vector.broadcast %6 : vector<1x128xf32> to vector<64x128xf32>
    %48 = arith.addf %46, %47 : vector<64x128xf32>
    %cst_19 = arith.constant dense<0.000000e+00> : vector<64x128xf32>
    %49 = tpu.matmul %44, %45, %cst_19 {dimension_numbers = #tpu.dot_dimension_numbers<[1], [0], [0], [1], [0, 0, 1, 1], [], []>} : vector<64x128xbf16>, vector<128x128xbf16>, vector<64x128xf32> -> vector<64x128xf32>
    %50 = vector.broadcast %6 : vector<1x128xf32> to vector<64x128xf32>
    %51 = arith.addf %49, %50 : vector<64x128xf32>
    %52 = math.tanh %48 : vector<64x128xf32>
    %53 = arith.truncf %52 : vector<64x128xf32> to vector<64x128xbf16>
    %54 = math.tanh %51 : vector<64x128xf32>
    %55 = arith.truncf %54 : vector<64x128xf32> to vector<64x128xbf16>
    %c0_20 = arith.constant 0 : index
    %c0_21 = arith.constant 0 : index
    %56 = vector.load %arg8[%c0_20, %c0_21] : memref<128x2xbf16, #tpu.memory_space<vmem>>, vector<128x2xbf16>
    %cst_22 = arith.constant dense<0.000000e+00> : vector<64x2xf32>
    %57 = tpu.matmul %53, %56, %cst_22 {dimension_numbers = #tpu.dot_dimension_numbers<[1], [0], [0], [1], [0, 0, 1, 1], [], []>} : vector<64x128xbf16>, vector<128x2xbf16>, vector<64x2xf32> -> vector<64x2xf32>
    %58 = vector.broadcast %7 : vector<1x2xf32> to vector<64x2xf32>
    %59 = arith.addf %57, %58 : vector<64x2xf32>
    %cst_23 = arith.constant dense<0.000000e+00> : vector<64x2xf32>
    %60 = tpu.matmul %55, %56, %cst_23 {dimension_numbers = #tpu.dot_dimension_numbers<[1], [0], [0], [1], [0, 0, 1, 1], [], []>} : vector<64x128xbf16>, vector<128x2xbf16>, vector<64x2xf32> -> vector<64x2xf32>
    %61 = vector.broadcast %7 : vector<1x2xf32> to vector<64x2xf32>
    %62 = arith.addf %60, %61 : vector<64x2xf32>
    %c0_24 = arith.constant 0 : index
    %c0_25 = arith.constant 0 : index
    %63 = vector.load %arg10[%c0_24, %c0_25] : memref<128x2xf32, #tpu.memory_space<vmem>>, vector<64x2xf32>
    tpu.vector_store %arg10[%c0_24, %c0_25], %59 {strides = array<i32>} : memref<128x2xf32, #tpu.memory_space<vmem>>, vector<64x2xf32>,
    %c64_26 = arith.constant 64 : index
    %c0_27 = arith.constant 0 : index
    %64 = vector.load %arg10[%c64_26, %c0_27] : memref<128x2xf32, #tpu.memory_space<vmem>>, vector<64x2xf32>
    tpu.vector_store %arg10[%c64_26, %c0_27], %62 {strides = array<i32>} : memref<128x2xf32, #tpu.memory_space<vmem>>, vector<64x2xf32>,
    return
  }
  func.func @transform_0(%arg0: i32) -> (i32, i32) {
    %c0_i32 = arith.constant 0 : i32
    %c0_i32_0 = arith.constant 0 : i32
    return %arg0, %c0_i32 : i32, i32
  }
  func.func @transform_1(%arg0: i32) -> (i32, i32) {
    %c0_i32 = arith.constant 0 : i32
    %c0_i32_0 = arith.constant 0 : i32
    %c0_i32_1 = arith.constant 0 : i32
    return %c0_i32, %c0_i32_0 : i32, i32
  }
  func.func @transform_2(%arg0: i32) -> (i32, i32) {
    %c0_i32 = arith.constant 0 : i32
    %c0_i32_0 = arith.constant 0 : i32
    %c0_i32_1 = arith.constant 0 : i32
    return %c0_i32, %c0_i32_0 : i32, i32
  }
  func.func @transform_3(%arg0: i32) -> (i32, i32) {
    %c0_i32 = arith.constant 0 : i32
    %c0_i32_0 = arith.constant 0 : i32
    %c0_i32_1 = arith.constant 0 : i32
    return %c0_i32, %c0_i32_0 : i32, i32
  }
  func.func @transform_4(%arg0: i32) -> (i32, i32) {
    %c0_i32 = arith.constant 0 : i32
    %c0_i32_0 = arith.constant 0 : i32
    %c0_i32_1 = arith.constant 0 : i32
    return %c0_i32, %c0_i32_0 : i32, i32
  }
  func.func @transform_5(%arg0: i32) -> (i32, i32) {
    %c0_i32 = arith.constant 0 : i32
    %c0_i32_0 = arith.constant 0 : i32
    %c0_i32_1 = arith.constant 0 : i32
    return %c0_i32, %c0_i32_0 : i32, i32
  }
  func.func @transform_6(%arg0: i32) -> (i32, i32) {
    %c0_i32 = arith.constant 0 : i32
    %c0_i32_0 = arith.constant 0 : i32
    %c0_i32_1 = arith.constant 0 : i32
    return %c0_i32, %c0_i32_0 : i32, i32
  }
  func.func @transform_7(%arg0: i32) -> (i32, i32) {
    %c0_i32 = arith.constant 0 : i32
    %c0_i32_0 = arith.constant 0 : i32
    %c0_i32_1 = arith.constant 0 : i32
    return %c0_i32, %c0_i32_0 : i32, i32
  }
  func.func @transform_8(%arg0: i32) -> (i32, i32) {
    %c0_i32 = arith.constant 0 : i32
    %c0_i32_0 = arith.constant 0 : i32
    %c0_i32_1 = arith.constant 0 : i32
    return %c0_i32, %c0_i32_0 : i32, i32
  }
  func.func @transform_9(%arg0: i32) -> (i32, i32) {
    %c0_i32 = arith.constant 0 : i32
    %c0_i32_0 = arith.constant 0 : i32
    return %arg0, %c0_i32 : i32, i32
  }
}

</mosaic_0001>

<llo_original>
// kernel: odefunc_forward.1
$region0: #{odefunc_forward.1}
  #allocation0 [shape = 'u32[]', space=smem, size = 0x4, offset = 0x4, fixed_abs, tag = 'smem constant byte address 0x4 - core index']
  #allocation1 [shape = 'u32[144,128]{1,0:T(1,128)}', space=vmem, size = 0x12000, scoped, tag = 'internal scratch']
  %s0 = inlined_call_operand.vmem [shape: f32[256,2], index: 0, kind: input, shape index: {}]
  %s1 = inlined_call_operand.vmem [shape: f32[2,256], index: 1, kind: input, shape index: {}]
  %s2 = inlined_call_operand.vmem [shape: f32[1,256], index: 2, kind: input, shape index: {}]
  %s3 = inlined_call_operand.vmem [shape: bf16[256,128], index: 3, kind: input, shape index: {}]
  %s4 = inlined_call_operand.vmem [shape: f32[1,128], index: 4, kind: input, shape index: {}]
  %s5 = inlined_call_operand.vmem [shape: bf16[128,128], index: 5, kind: input, shape index: {}]
  %s6 = inlined_call_operand.vmem [shape: f32[1,128], index: 6, kind: input, shape index: {}]
  %s7 = inlined_call_operand.vmem [shape: bf16[128,2], index: 7, kind: input, shape index: {}]
  %s8 = inlined_call_operand.vmem [shape: f32[1,2], index: 8, kind: input, shape index: {}]
  %s9 = inlined_call_operand.vmem [shape: f32[256,2], index: 9, kind: output, shape index: {}]
  %s10 = sld [smem:[#allocation0]]
  $region69: #{odefunc_forward.1} parent=0
    _
  %s12 = ssub.s32 1, %s10
  %s13 = scalar_select 0, %s12, %s10
  loop: start=0, step=1, limit=4
  $region2: #{odefunc_forward.1} parent=0 // loop_pre_header
    _
  $region3: #{odefunc_forward.1} parent=0 // loop_header
    %s15 = sphi 0, %s19
    %p16 = scmp.ge.s32.totalorder %s15, 4
    %s25 = sphi 0, %s27
    %s28 = sphi 0, %s25
    %s29 = sphi 0, %s28
    %s45 = sphi 0, %s29
    %s49 = sphi 0, %s49
    %s51 = sphi 0, %s49
    %s52 = sphi 0, %s51
    %s66 = sphi 0, %s52
    %s70 = sphi 0, %s70
    %s72 = sphi 0, %s70
    %s73 = sphi 0, %s72
    %s87 = sphi 0, %s73
    %s91 = sphi 0, %s91
    %s93 = sphi 0, %s91
    %s94 = sphi 0, %s93
    %s108 = sphi 0, %s94
    %s112 = sphi 0, %s112
    %s114 = sphi 0, %s112
    %s115 = sphi 0, %s114
    %s129 = sphi 0, %s115
    %s133 = sphi 0, %s133
    %s135 = sphi 0, %s133
    %s136 = sphi 0, %s135
    %s150 = sphi 0, %s136
    %s154 = sphi 0, %s154
    %s156 = sphi 0, %s154
    %s157 = sphi 0, %s156
    %s171 = sphi 0, %s157
    %s175 = sphi 0, %s175
    %s177 = sphi 0, %s175
    %s178 = sphi 0, %s177
    %s192 = sphi 0, %s178
    %s196 = sphi 0, %s196
    %s198 = sphi 0, %s196
    %s199 = sphi 0, %s198
    %s213 = sphi 0, %s199
    %s219 = sphi 0, %s221
    %s222 = sphi 0, %s219
    %s223 = sphi 0, %s222
    %s239 = sphi 0, %s223
  $region4: #{odefunc_forward.1} parent=0 // loop_header_branch
    %18 = sbr.rel (%p16) target = $region8
  $region5: #{odefunc_forward.1} parent=0 // loop_body
    %s20 = ssub.s32 %s15, 1
    %s21 = ssub.s32 %s15, 2
    %s22 = sadd.s32 %s15, 1
    %s23 = ssub.s32 %s15, %s22
    %p24 = scmp.eq.s32.totalorder %s23, 0
    %s26 = sadd.s32 %s25, 1
    %s27 = scalar_select %p24, %s25, %s26
    %p30 = pneg %p24
    %p31 = scmp.eq.s32.totalorder %s15, 1
    %p32 = por %p30, %p31
    %p33 = scmp.ne.s32.totalorder %s25, %s28
    %p34 = scmp.eq.s32.totalorder %s15, 0
    %p35 = por %p33, %p34
    %p36 = scmp.ne.s32.totalorder %s25, %s28
    %p37 = scmp.eq.s32.totalorder %s20, 1
    %p38 = por %p36, %p37
    %p39 = scmp.ne.s32.totalorder %s28, %s29
    %p40 = scmp.eq.s32.totalorder %s20, 0
    %p41 = por %p39, %p40
    %p42 = scmp.ne.s32.totalorder %s28, %s29
    %p43 = scmp.eq.s32.totalorder %s21, 1
    %p44 = por %p42, %p43
    %p46 = scmp.ne.s32.totalorder %s29, %s45
    %p47 = scmp.eq.s32.totalorder %s21, 0
    %p48 = por %p46, %p47
    %s50 = sadd.s32 %s49, 1
    %p53 = scmp.eq.s32.totalorder %s15, 1
    %p54 = scmp.ne.s32.totalorder %s49, %s51
    %p55 = scmp.eq.s32.totalorder %s15, 0
    %p56 = por %p54, %p55
    %p57 = scmp.ne.s32.totalorder %s49, %s51
    %p58 = scmp.eq.s32.totalorder %s20, 1
    %p59 = por %p57, %p58
    %p60 = scmp.ne.s32.totalorder %s51, %s52
    %p61 = scmp.eq.s32.totalorder %s20, 0
    %p62 = por %p60, %p61
    %p63 = scmp.ne.s32.totalorder %s51, %s52
    %p64 = scmp.eq.s32.totalorder %s21, 1
    %p65 = por %p63, %p64
    %p67 = scmp.ne.s32.totalorder %s52, %s66
    %p68 = scmp.eq.s32.totalorder %s21, 0
    %p69 = por %p67, %p68
    %s71 = sadd.s32 %s70, 1
    %p74 = scmp.eq.s32.totalorder %s15, 1
    %p75 = scmp.ne.s32.totalorder %s70, %s72
    %p76 = scmp.eq.s32.totalorder %s15, 0
    %p77 = por %p75, %p76
    %p78 = scmp.ne.s32.totalorder %s70, %s72
    %p79 = scmp.eq.s32.totalorder %s20, 1
    %p80 = por %p78, %p79
    %p81 = scmp.ne.s32.totalorder %s72, %s73
    %p82 = scmp.eq.s32.totalorder %s20, 0
    %p83 = por %p81, %p82
    %p84 = scmp.ne.s32.totalorder %s72, %s73
    %p85 = scmp.eq.s32.totalorder %s21, 1
    %p86 = por %p84, %p85
    %p88 = scmp.ne.s32.totalorder %s73, %s87
    %p89 = scmp.eq.s32.totalorder %s21, 0
    %p90 = por %p88, %p89
    %s92 = sadd.s32 %s91, 1
    %p95 = scmp.eq.s32.totalorder %s15, 1
    %p96 = scmp.ne.s32.totalorder %s91, %s93
    %p97 = scmp.eq.s32.totalorder %s15, 0
    %p98 = por %p96, %p97
    %p99 = scmp.ne.s32.totalorder %s91, %s93
    %p100 = scmp.eq.s32.totalorder %s20, 1
    %p101 = por %p99, %p100
    %p102 = scmp.ne.s32.totalorder %s93, %s94
    %p103 = scmp.eq.s32.totalorder %s20, 0
    %p104 = por %p102, %p103
    %p105 = scmp.ne.s32.totalorder %s93, %s94
    %p106 = scmp.eq.s32.totalorder %s21, 1
    %p107 = por %p105, %p106
    %p109 = scmp.ne.s32.totalorder %s94, %s108
    %p110 = scmp.eq.s32.totalorder %s21, 0
    %p111 = por %p109, %p110
    %s113 = sadd.s32 %s112, 1
    %p116 = scmp.eq.s32.totalorder %s15, 1
    %p117 = scmp.ne.s32.totalorder %s112, %s114
    %p118 = scmp.eq.s32.totalorder %s15, 0
    %p119 = por %p117, %p118
    %p120 = scmp.ne.s32.totalorder %s112, %s114
    %p121 = scmp.eq.s32.totalorder %s20, 1
    %p122 = por %p120, %p121
    %p123 = scmp.ne.s32.totalorder %s114, %s115
    %p124 = scmp.eq.s32.totalorder %s20, 0
    %p125 = por %p123, %p124
    %p126 = scmp.ne.s32.totalorder %s114, %s115
    %p127 = scmp.eq.s32.totalorder %s21, 1
    %p128 = por %p126, %p127
    %p130 = scmp.ne.s32.totalorder %s115, %s129
    %p131 = scmp.eq.s32.totalorder %s21, 0
    %p132 = por %p130, %p131
    %s134 = sadd.s32 %s133, 1
    %p137 = scmp.eq.s32.totalorder %s15, 1
    %p138 = scmp.ne.s32.totalorder %s133, %s135
    %p139 = scmp.eq.s32.totalorder %s15, 0
    %p140 = por %p138, %p139
    %p141 = scmp.ne.s32.totalorder %s133, %s135
    %p142 = scmp.eq.s32.totalorder %s20, 1
    %p143 = por %p141, %p142
    %p144 = scmp.ne.s32.totalorder %s135, %s136
    %p145 = scmp.eq.s32.totalorder %s20, 0
    %p146 = por %p144, %p145
    %p147 = scmp.ne.s32.totalorder %s135, %s136
    %p148 = scmp.eq.s32.totalorder %s21, 1
    %p149 = por %p147, %p148
    %p151 = scmp.ne.s32.totalorder %s136, %s150
    %p152 = scmp.eq.s32.totalorder %s21, 0
    %p153 = por %p151, %p152
    %s155 = sadd.s32 %s154, 1
    %p158 = scmp.eq.s32.totalorder %s15, 1
    %p159 = scmp.ne.s32.totalorder %s154, %s156
    %p160 = scmp.eq.s32.totalorder %s15, 0
    %p161 = por %p159, %p160
    %p162 = scmp.ne.s32.totalorder %s154, %s156
    %p163 = scmp.eq.s32.totalorder %s20, 1
    %p164 = por %p162, %p163
    %p165 = scmp.ne.s32.totalorder %s156, %s157
    %p166 = scmp.eq.s32.totalorder %s20, 0
    %p167 = por %p165, %p166
    %p168 = scmp.ne.s32.totalorder %s156, %s157
    %p169 = scmp.eq.s32.totalorder %s21, 1
    %p170 = por %p168, %p169
    %p172 = scmp.ne.s32.totalorder %s157, %s171
    %p173 = scmp.eq.s32.totalorder %s21, 0
    %p174 = por %p172, %p173
    %s176 = sadd.s32 %s175, 1
    %p179 = scmp.eq.s32.totalorder %s15, 1
    %p180 = scmp.ne.s32.totalorder %s175, %s177
    %p181 = scmp.eq.s32.totalorder %s15, 0
    %p182 = por %p180, %p181
    %p183 = scmp.ne.s32.totalorder %s175, %s177
    %p184 = scmp.eq.s32.totalorder %s20, 1
    %p185 = por %p183, %p184
    %p186 = scmp.ne.s32.totalorder %s177, %s178
    %p187 = scmp.eq.s32.totalorder %s20, 0
    %p188 = por %p186, %p187
    %p189 = scmp.ne.s32.totalorder %s177, %s178
    %p190 = scmp.eq.s32.totalorder %s21, 1
    %p191 = por %p189, %p190
    %p193 = scmp.ne.s32.totalorder %s178, %s192
    %p194 = scmp.eq.s32.totalorder %s21, 0
    %p195 = por %p193, %p194
    %s197 = sadd.s32 %s196, 1
    %p200 = scmp.eq.s32.totalorder %s15, 1
    %p201 = scmp.ne.s32.totalorder %s196, %s198
    %p202 = scmp.eq.s32.totalorder %s15, 0
    %p203 = por %p201, %p202
    %p204 = scmp.ne.s32.totalorder %s196, %s198
    %p205 = scmp.eq.s32.totalorder %s20, 1
    %p206 = por %p204, %p205
    %p207 = scmp.ne.s32.totalorder %s198, %s199
    %p208 = scmp.eq.s32.totalorder %s20, 0
    %p209 = por %p207, %p208
    %p210 = scmp.ne.s32.totalorder %s198, %s199
    %p211 = scmp.eq.s32.totalorder %s21, 1
    %p212 = por %p210, %p211
    %p214 = scmp.ne.s32.totalorder %s199, %s213
    %p215 = scmp.eq.s32.totalorder %s21, 0
    %p216 = por %p214, %p215
    %s217 = ssub.s32 %s15, %s22
    %p218 = scmp.eq.s32.totalorder %s217, 0
    %s220 = sadd.s32 %s219, 1
    %s221 = scalar_select %p218, %s219, %s220
    %p224 = pneg %p218
    %p225 = scmp.eq.s32.totalorder %s15, 1
    %p226 = por %p224, %p225
    %p227 = scmp.ne.s32.totalorder %s219, %s222
    %p228 = scmp.eq.s32.totalorder %s15, 0
    %p229 = por %p227, %p228
    %p230 = scmp.ne.s32.totalorder %s219, %s222
    %p231 = scmp.eq.s32.totalorder %s20, 1
    %p232 = por %p230, %p231
    %p233 = scmp.ne.s32.totalorder %s222, %s223
    %p234 = scmp.eq.s32.totalorder %s20, 0
    %p235 = por %p233, %p234
    %p236 = scmp.ne.s32.totalorder %s222, %s223
    %p237 = scmp.eq.s32.totalorder %s21, 1
    %p238 = por %p236, %p237
    %p240 = scmp.ne.s32.totalorder %s223, %s239
    %p241 = scmp.eq.s32.totalorder %s21, 0
    %p242 = por %p240, %p241
    %p243 = scmp.le.s32.totalorder 1, %s15
    %p244 = scmp.lt.s32.totalorder %s15, 3
    %p245 = pnand %p243, %p244
    %p246 = pneg %p245
    // Predicated region
    $region9: #{odefunc_forward.1} parent=5 // pred_check
      _
    $region10: #{odefunc_forward.1} parent=5 // pred_check_branch
      %248 = sbr.rel (%p245) target = $region12
    $region11: #{odefunc_forward.1} parent=5 // pred_region
      %s249 = ssub.s32 %s15, 1
      // Predicated region
      $region13: #{odefunc_forward.1} parent=11 // pred_check
        %p250 = pneg %p62
      $region14: #{odefunc_forward.1} parent=11 // pred_check_branch
        %252 = sbr.rel (%p250) target = $region16
      $region15: #{odefunc_forward.1} parent=11 // pred_region
        _
      $region16: #{odefunc_forward.1} parent=11 // pred_fallthru
        _
      // Predicated region
      $region17: #{odefunc_forward.1} parent=11 // pred_check
        %p253 = pneg %p83
      $region18: #{odefunc_forward.1} parent=11 // pred_check_branch
        %255 = sbr.rel (%p253) target = $region20
      $region19: #{odefunc_forward.1} parent=11 // pred_region
        _
      $region20: #{odefunc_forward.1} parent=11 // pred_fallthru
        _
      // Predicated region
      $region21: #{odefunc_forward.1} parent=11 // pred_check
        %p256 = pneg %p104
      $region22: #{odefunc_forward.1} parent=11 // pred_check_branch
        %258 = sbr.rel (%p256) target = $region24
      $region23: #{odefunc_forward.1} parent=11 // pred_region
        _
      $region24: #{odefunc_forward.1} parent=11 // pred_fallthru
        _
      // Predicated region
      $region25: #{odefunc_forward.1} parent=11 // pred_check
        %p259 = pneg %p125
      $region26: #{odefunc_forward.1} parent=11 // pred_check_branch
        %261 = sbr.rel (%p259) target = $region28
      $region27: #{odefunc_forward.1} parent=11 // pred_region
        _
      $region28: #{odefunc_forward.1} parent=11 // pred_fallthru
        _
      // Predicated region
      $region29: #{odefunc_forward.1} parent=11 // pred_check
        %p262 = pneg %p146
      $region30: #{odefunc_forward.1} parent=11 // pred_check_branch
        %264 = sbr.rel (%p262) target = $region32
      $region31: #{odefunc_forward.1} parent=11 // pred_region
        _
      $region32: #{odefunc_forward.1} parent=11 // pred_fallthru
        _
      // Predicated region
      $region33: #{odefunc_forward.1} parent=11 // pred_check
        %p265 = pneg %p167
      $region34: #{odefunc_forward.1} parent=11 // pred_check_branch
        %267 = sbr.rel (%p265) target = $region36
      $region35: #{odefunc_forward.1} parent=11 // pred_region
        _
      $region36: #{odefunc_forward.1} parent=11 // pred_fallthru
        _
      // Predicated region
      $region37: #{odefunc_forward.1} parent=11 // pred_check
        %p268 = pneg %p188
      $region38: #{odefunc_forward.1} parent=11 // pred_check_branch
        %270 = sbr.rel (%p268) target = $region40
      $region39: #{odefunc_forward.1} parent=11 // pred_region
        _
      $region40: #{odefunc_forward.1} parent=11 // pred_fallthru
        _
      // Predicated region
      $region41: #{odefunc_forward.1} parent=11 // pred_check
        %p271 = pneg %p209
      $region42: #{odefunc_forward.1} parent=11 // pred_check_branch
        %273 = sbr.rel (%p271) target = $region44
      $region43: #{odefunc_forward.1} parent=11 // pred_region
        _
      $region44: #{odefunc_forward.1} parent=11 // pred_fallthru
        _
    $region12: #{odefunc_forward.1} parent=5 // pred_fallthru
      _
    %p274 = scmp.lt.s32.totalorder %s15, 2
    // Predicated region
    $region45: #{odefunc_forward.1} parent=5 // pred_check
      %p275 = pneg %p274
    $region46: #{odefunc_forward.1} parent=5 // pred_check_branch
      %277 = sbr.rel (%p275) target = $region48
    $region47: #{odefunc_forward.1} parent=5 // pred_region
      // Predicated region
      $region49: #{odefunc_forward.1} parent=47 // pred_check
        %p278 = pneg %p35
      $region50: #{odefunc_forward.1} parent=47 // pred_check_branch
        %280 = sbr.rel (%p278) target = $region52
      $region51: #{odefunc_forward.1} parent=47 // pred_region
        %s281 = smul.u32 16, %s15
        %p282 = scmp.lt.s32.totalorder %s281, 31
        %s283 = scalar_select %p282, %s281, 31
        %s284 = smul.addr %s283, 8
        %s285 = scalar_lea.vmem %s0, %s284
        %s286 = smul.u32 16, %s15
      $region52: #{odefunc_forward.1} parent=47 // pred_fallthru
        _
    $region48: #{odefunc_forward.1} parent=5 // pred_fallthru
      _
    %p287 = scmp.le.s32.totalorder 1, %s15
    %p288 = scmp.lt.s32.totalorder %s15, 3
    %p289 = pnand %p287, %p288
    %p290 = pneg %p289
    // Predicated region
    $region53: #{odefunc_forward.1} parent=5 // pred_check
      _
    $region54: #{odefunc_forward.1} parent=5 // pred_check_branch
      %292 = sbr.rel (%p289) target = $region56
    $region55: #{odefunc_forward.1} parent=5 // pred_region
      %s293 = ssub.s32 %s15, 1
      %s294 = smul.u32 16, %s20
      %p295 = scmp.lt.s32.totalorder %s294, 31
      %s296 = scalar_select %p295, %s294, 31
      %s297 = smul.addr %s296, 8
      %s298 = scalar_lea.vmem %s0, %s297
      %p299 = pneg %p41
      %p300 = pneg %p38
      %p301 = pneg %p62
      %p302 = pneg %p59
      %p303 = pneg %p83
      %p304 = pneg %p80
      %p305 = pneg %p104
      %p306 = pneg %p101
      %p307 = pneg %p125
      %p308 = pneg %p122
      %p309 = pneg %p146
      %p310 = pneg %p143
      %p311 = pneg %p167
      %p312 = pneg %p164
      %p313 = pneg %p188
      %p314 = pneg %p185
      %p315 = pneg %p209
      %p316 = pneg %p206
      %p317 = pneg %p235
      %p318 = pneg %p232
      %s319 = smul.u32 16, %s20
      %p320 = scmp.lt.s32.totalorder %s319, 31
      %s321 = scalar_select %p320, %s319, 31
      %s322 = smul.addr %s321, 8
      %s323 = scalar_lea.vmem %s9, %s322
      %s324 = smul.u32 16, %s20
      %p325 = scmp.lt.s32.totalorder %s324, 31
      %s326 = scalar_select %p325, %s324, 31
      %s327 = smul.addr %s326, 8
      %s328 = scalar_lea.vmem %s0, %s327
      %s329 = smul.u32 16, %s20
      %s330 = smul.u32 16, %s20
      %p331 = scmp.lt.s32.totalorder %s330, 31
      %s332 = scalar_select %p331, %s330, 31
      %s333 = smul.addr %s332, 8
      %s334 = scalar_lea.vmem %s9, %s333
      %s335 = smul.u32 16, %s20
      %v337 = vld [vmem:[%s328] sm:$0xff]
      %v338 = vld [vmem:[%s328 + $0x8] sm:$0xff]
      %v339 = vld [vmem:[%s328 + $0x10] sm:$0xff]
      %v340 = vld [vmem:[%s328 + $0x18] sm:$0xff]
      %v341 = vld [vmem:[%s328 + $0x20] sm:$0xff]
      %v342 = vld [vmem:[%s328 + $0x28] sm:$0xff]
      %v343 = vld [vmem:[%s328 + $0x30] sm:$0xff]
      %v344 = vld [vmem:[%s328 + $0x38] sm:$0xff]
      %v345 = vld [vmem:[%s328 + $0x40] sm:$0xff]
      %v346 = vld [vmem:[%s328 + $0x48] sm:$0xff]
      %v347 = vld [vmem:[%s328 + $0x50] sm:$0xff]
      %v348 = vld [vmem:[%s328 + $0x58] sm:$0xff]
      %v349 = vld [vmem:[%s328 + $0x60] sm:$0xff]
      %v350 = vld [vmem:[%s328 + $0x68] sm:$0xff]
      %v351 = vld [vmem:[%s328 + $0x70] sm:$0xff]
      %v352 = vld [vmem:[%s328 + $0x78] sm:$0xff]
      %v353 = vld [vmem:[%s1] ss:$2 sm:$0x3]
      %s354 = scalar_lea.vmem %s1, 1
      %v355 = vld [vmem:[%s354] ss:$2 sm:$0x3]
      %v356 = vld [vmem:[%s2] sm:$0x3]
      %v357 = vld [vmem:[%s4] sm:$0x1]
      %v358 = vld [vmem:[%s6] sm:$0x1]
      %v359 = vld [vmem:[%s8] sm:$0x1]
      %361 = vset.pattern.permute.xlu0 0
      %362 = vperm.xlu0 %361, %v337
      %v363 = vpop.permute.xlu0 %362
      %366 = vset.pattern.permute.xlu0 0
      %367 = vperm.xlu0 %366, %v338
      %v368 = vpop.permute.xlu0 %367
      %371 = vset.pattern.permute.xlu0 0
      %372 = vperm.xlu0 %371, %v339
      %v373 = vpop.permute.xlu0 %372
      %376 = vset.pattern.permute.xlu0 0
      %377 = vperm.xlu0 %376, %v340
      %v378 = vpop.permute.xlu0 %377
      %381 = vset.pattern.permute.xlu0 0
      %382 = vperm.xlu0 %381, %v341
      %v383 = vpop.permute.xlu0 %382
      %386 = vset.pattern.permute.xlu0 0
      %387 = vperm.xlu0 %386, %v342
      %v388 = vpop.permute.xlu0 %387
      %391 = vset.pattern.permute.xlu0 0
      %392 = vperm.xlu0 %391, %v343
      %v393 = vpop.permute.xlu0 %392
      %396 = vset.pattern.permute.xlu0 0
      %397 = vperm.xlu0 %396, %v344
      %v398 = vpop.permute.xlu0 %397
      %v401 = vlaneseq
      %v402 = vshrl.u32 %v401, 7
      %v403 = vsub.s32 0, %v402
      %v404 = vrot.slane %v353, %v403
      %v405 = vlaneseq
      %v406 = vshrl.u32 %v405, 7
      %v407 = vsub.s32 1, %v406
      %v408 = vrot.slane %v353, %v407
      %v411 = vmul.f32 %v363, %v404
      %v412 = vmul.f32 %v363, %v408
      %v413 = vmul.f32 %v368, %v404
      %v414 = vmul.f32 %v368, %v408
      %v415 = vmul.f32 %v373, %v404
      %v416 = vmul.f32 %v373, %v408
      %v417 = vmul.f32 %v378, %v404
      %v418 = vmul.f32 %v378, %v408
      %v419 = vmul.f32 %v383, %v404
      %v420 = vmul.f32 %v383, %v408
      %v421 = vmul.f32 %v388, %v404
      %v422 = vmul.f32 %v388, %v408
      %v423 = vmul.f32 %v393, %v404
      %v424 = vmul.f32 %v393, %v408
      %v425 = vmul.f32 %v398, %v404
      %v426 = vmul.f32 %v398, %v408
      %427 = vset.pattern.permute.xlu0 1
      %428 = vperm.xlu0 %427, %v337
      %v429 = vpop.permute.xlu0 %428
      %431 = vset.pattern.permute.xlu0 1
      %432 = vperm.xlu0 %431, %v338
      %v433 = vpop.permute.xlu0 %432
      %435 = vset.pattern.permute.xlu0 1
      %436 = vperm.xlu0 %435, %v339
      %v437 = vpop.permute.xlu0 %436
      %439 = vset.pattern.permute.xlu0 1
      %440 = vperm.xlu0 %439, %v340
      %v441 = vpop.permute.xlu0 %440
      %443 = vset.pattern.permute.xlu0 1
      %444 = vperm.xlu0 %443, %v341
      %v445 = vpop.permute.xlu0 %444
      %447 = vset.pattern.permute.xlu0 1
      %448 = vperm.xlu0 %447, %v342
      %v449 = vpop.permute.xlu0 %448
      %451 = vset.pattern.permute.xlu0 1
      %452 = vperm.xlu0 %451, %v343
      %v453 = vpop.permute.xlu0 %452
      %455 = vset.pattern.permute.xlu0 1
      %456 = vperm.xlu0 %455, %v344
      %v457 = vpop.permute.xlu0 %456
      %v460 = vlaneseq
      %v461 = vshrl.u32 %v460, 7
      %v462 = vsub.s32 0, %v461
      %v463 = vrot.slane %v355, %v462
      %v464 = vlaneseq
      %v465 = vshrl.u32 %v464, 7
      %v466 = vsub.s32 1, %v465
      %v467 = vrot.slane %v355, %v466
      %v470 = vmul.f32 %v429, %v463
      %v471 = vmul.f32 %v429, %v467
      %v472 = vmul.f32 %v433, %v463
      %v473 = vmul.f32 %v433, %v467
      %v474 = vmul.f32 %v437, %v463
      %v475 = vmul.f32 %v437, %v467
      %v476 = vmul.f32 %v441, %v463
      %v477 = vmul.f32 %v441, %v467
      %v478 = vmul.f32 %v445, %v463
      %v479 = vmul.f32 %v445, %v467
      %v480 = vmul.f32 %v449, %v463
      %v481 = vmul.f32 %v449, %v467
      %v482 = vmul.f32 %v453, %v463
      %v483 = vmul.f32 %v453, %v467
      %v484 = vmul.f32 %v457, %v463
      %v485 = vmul.f32 %v457, %v467
      %v486 = vadd.f32 %v411, %v470
      %v487 = vadd.f32 %v412, %v471
      %v488 = vadd.f32 %v413, %v472
      %v489 = vadd.f32 %v414, %v473
      %v490 = vadd.f32 %v415, %v474
      %v491 = vadd.f32 %v416, %v475
      %v492 = vadd.f32 %v417, %v476
      %v493 = vadd.f32 %v418, %v477
      %v494 = vadd.f32 %v419, %v478
      %v495 = vadd.f32 %v420, %v479
      %v496 = vadd.f32 %v421, %v480
      %v497 = vadd.f32 %v422, %v481
      %v498 = vadd.f32 %v423, %v482
      %v499 = vadd.f32 %v424, %v483
      %v500 = vadd.f32 %v425, %v484
      %v501 = vadd.f32 %v426, %v485
      %v503 = vlaneseq
      %v504 = vshrl.u32 %v503, 7
      %v505 = vsub.s32 0, %v504
      %v506 = vrot.slane %v356, %v505
      %v507 = vlaneseq
      %v508 = vshrl.u32 %v507, 7
      %v509 = vsub.s32 1, %v508
      %v510 = vrot.slane %v356, %v509
      %v513 = vadd.f32 %v486, %v506
      %v514 = vadd.f32 %v487, %v510
      %v515 = vadd.f32 %v488, %v506
      %v516 = vadd.f32 %v489, %v510
      %v517 = vadd.f32 %v490, %v506
      %v518 = vadd.f32 %v491, %v510
      %v519 = vadd.f32 %v492, %v506
      %v520 = vadd.f32 %v493, %v510
      %v521 = vadd.f32 %v494, %v506
      %v522 = vadd.f32 %v495, %v510
      %v523 = vadd.f32 %v496, %v506
      %v524 = vadd.f32 %v497, %v510
      %v525 = vadd.f32 %v498, %v506
      %v526 = vadd.f32 %v499, %v510
      %v527 = vadd.f32 %v500, %v506
      %v528 = vadd.f32 %v501, %v510
      %v529 = vtanh.pop %v513
      %v530 = vtanh.pop %v514
      %v531 = vtanh.pop %v515
      %v532 = vtanh.pop %v516
      %v533 = vtanh.pop %v517
      %v534 = vtanh.pop %v518
      %v535 = vtanh.pop %v519
      %v536 = vtanh.pop %v520
      %v537 = vtanh.pop %v521
      %v538 = vtanh.pop %v522
      %v539 = vtanh.pop %v523
      %v540 = vtanh.pop %v524
      %v541 = vtanh.pop %v525
      %v542 = vtanh.pop %v526
      %v543 = vtanh.pop %v527
      %v544 = vtanh.pop %v528
      %v545 = vpack.c.bf16 %v531, %v529
      %v546 = vpack.c.bf16 %v532, %v530
      %v547 = vpack.c.bf16 %v535, %v533
      %v548 = vpack.c.bf16 %v536, %v534
      %v549 = vpack.c.bf16 %v539, %v537
      %v550 = vpack.c.bf16 %v540, %v538
      %v551 = vpack.c.bf16 %v543, %v541
      %v552 = vpack.c.bf16 %v544, %v542
      %554 = vset.pattern.permute.xlu0 0
      %555 = vperm.xlu0 %554, %v345
      %v556 = vpop.permute.xlu0 %555
      %559 = vset.pattern.permute.xlu0 0
      %560 = vperm.xlu0 %559, %v346
      %v561 = vpop.permute.xlu0 %560
      %564 = vset.pattern.permute.xlu0 0
      %565 = vperm.xlu0 %564, %v347
      %v566 = vpop.permute.xlu0 %565
      %569 = vset.pattern.permute.xlu0 0
      %570 = vperm.xlu0 %569, %v348
      %v571 = vpop.permute.xlu0 %570
      %574 = vset.pattern.permute.xlu0 0
      %575 = vperm.xlu0 %574, %v349
      %v576 = vpop.permute.xlu0 %575
      %579 = vset.pattern.permute.xlu0 0
      %580 = vperm.xlu0 %579, %v350
      %v581 = vpop.permute.xlu0 %580
      %584 = vset.pattern.permute.xlu0 0
      %585 = vperm.xlu0 %584, %v351
      %v586 = vpop.permute.xlu0 %585
      %589 = vset.pattern.permute.xlu0 0
      %590 = vperm.xlu0 %589, %v352
      %v591 = vpop.permute.xlu0 %590
      %v593 = vmul.f32 %v556, %v404
      %v594 = vmul.f32 %v556, %v408
      %v595 = vmul.f32 %v561, %v404
      %v596 = vmul.f32 %v561, %v408
      %v597 = vmul.f32 %v566, %v404
      %v598 = vmul.f32 %v566, %v408
      %v599 = vmul.f32 %v571, %v404
      %v600 = vmul.f32 %v571, %v408
      %v601 = vmul.f32 %v576, %v404
      %v602 = vmul.f32 %v576, %v408
      %v603 = vmul.f32 %v581, %v404
      %v604 = vmul.f32 %v581, %v408
      %v605 = vmul.f32 %v586, %v404
      %v606 = vmul.f32 %v586, %v408
      %v607 = vmul.f32 %v591, %v404
      %v608 = vmul.f32 %v591, %v408
      %609 = vset.pattern.permute.xlu0 1
      %610 = vperm.xlu0 %609, %v345
      %v611 = vpop.permute.xlu0 %610
      %613 = vset.pattern.permute.xlu0 1
      %614 = vperm.xlu0 %613, %v346
      %v615 = vpop.permute.xlu0 %614
      %617 = vset.pattern.permute.xlu0 1
      %618 = vperm.xlu0 %617, %v347
      %v619 = vpop.permute.xlu0 %618
      %621 = vset.pattern.permute.xlu0 1
      %622 = vperm.xlu0 %621, %v348
      %v623 = vpop.permute.xlu0 %622
      %625 = vset.pattern.permute.xlu0 1
      %626 = vperm.xlu0 %625, %v349
      %v627 = vpop.permute.xlu0 %626
      %629 = vset.pattern.permute.xlu0 1
      %630 = vperm.xlu0 %629, %v350
      %v631 = vpop.permute.xlu0 %630
      %633 = vset.pattern.permute.xlu0 1
      %634 = vperm.xlu0 %633, %v351
      %v635 = vpop.permute.xlu0 %634
      %637 = vset.pattern.permute.xlu0 1
      %638 = vperm.xlu0 %637, %v352
      %v639 = vpop.permute.xlu0 %638
      %v641 = vmul.f32 %v611, %v463
      %v642 = vmul.f32 %v611, %v467
      %v643 = vmul.f32 %v615, %v463
      %v644 = vmul.f32 %v615, %v467
      %v645 = vmul.f32 %v619, %v463
      %v646 = vmul.f32 %v619, %v467
      %v647 = vmul.f32 %v623, %v463
      %v648 = vmul.f32 %v623, %v467
      %v649 = vmul.f32 %v627, %v463
      %v650 = vmul.f32 %v627, %v467
      %v651 = vmul.f32 %v631, %v463
      %v652 = vmul.f32 %v631, %v467
      %v653 = vmul.f32 %v635, %v463
      %v654 = vmul.f32 %v635, %v467
      %v655 = vmul.f32 %v639, %v463
      %v656 = vmul.f32 %v639, %v467
      %v657 = vadd.f32 %v593, %v641
      %v658 = vadd.f32 %v594, %v642
      %v659 = vadd.f32 %v595, %v643
      %v660 = vadd.f32 %v596, %v644
      %v661 = vadd.f32 %v597, %v645
      %v662 = vadd.f32 %v598, %v646
      %v663 = vadd.f32 %v599, %v647
      %v664 = vadd.f32 %v600, %v648
      %v665 = vadd.f32 %v601, %v649
      %v666 = vadd.f32 %v602, %v650
      %v667 = vadd.f32 %v603, %v651
      %v668 = vadd.f32 %v604, %v652
      %v669 = vadd.f32 %v605, %v653
      %v670 = vadd.f32 %v606, %v654
      %v671 = vadd.f32 %v607, %v655
      %v672 = vadd.f32 %v608, %v656
      %v673 = vadd.f32 %v657, %v506
      %v674 = vadd.f32 %v658, %v510
      %v675 = vadd.f32 %v659, %v506
      %v676 = vadd.f32 %v660, %v510
      %v677 = vadd.f32 %v661, %v506
      %v678 = vadd.f32 %v662, %v510
      %v679 = vadd.f32 %v663, %v506
      %v680 = vadd.f32 %v664, %v510
      %v681 = vadd.f32 %v665, %v506
      %v682 = vadd.f32 %v666, %v510
      %v683 = vadd.f32 %v667, %v506
      %v684 = vadd.f32 %v668, %v510
      %v685 = vadd.f32 %v669, %v506
      %v686 = vadd.f32 %v670, %v510
      %v687 = vadd.f32 %v671, %v506
      %v688 = vadd.f32 %v672, %v510
      %v689 = vtanh.pop %v673
      %v690 = vtanh.pop %v674
      %v691 = vtanh.pop %v675
      %v692 = vtanh.pop %v676
      %v693 = vtanh.pop %v677
      %v694 = vtanh.pop %v678
      %v695 = vtanh.pop %v679
      %v696 = vtanh.pop %v680
      %v697 = vtanh.pop %v681
      %v698 = vtanh.pop %v682
      %v699 = vtanh.pop %v683
      %v700 = vtanh.pop %v684
      %v701 = vtanh.pop %v685
      %v702 = vtanh.pop %v686
      %v703 = vtanh.pop %v687
      %v704 = vtanh.pop %v688
      %v705 = vpack.c.bf16 %v691, %v689
      %v706 = vpack.c.bf16 %v692, %v690
      %v707 = vpack.c.bf16 %v695, %v693
      %v708 = vpack.c.bf16 %v696, %v694
      %v709 = vpack.c.bf16 %v699, %v697
      %v710 = vpack.c.bf16 %v700, %v698
      %v711 = vpack.c.bf16 %v703, %v701
      %v712 = vpack.c.bf16 %v704, %v702
      %v713 = vld [vmem:[%s3] sm:$0xf]
      %v714 = vld [vmem:[%s3 + $0x4] sm:$0xf]
      %v715 = vld [vmem:[%s3 + $0x8] sm:$0xf]
      %v716 = vld [vmem:[%s3 + $0xc] sm:$0xf]
      %v717 = vld [vmem:[%s3 + $0x10] sm:$0xf]
      %v718 = vld [vmem:[%s3 + $0x14] sm:$0xf]
      %v719 = vld [vmem:[%s3 + $0x18] sm:$0xf]
      %v720 = vld [vmem:[%s3 + $0x1c] sm:$0xf]
      %v721 = vld [vmem:[%s3 + $0x20] sm:$0xf]
      %v722 = vld [vmem:[%s3 + $0x24] sm:$0xf]
      %v723 = vld [vmem:[%s3 + $0x28] sm:$0xf]
      %v724 = vld [vmem:[%s3 + $0x2c] sm:$0xf]
      %v725 = vld [vmem:[%s3 + $0x30] sm:$0xf]
      %v726 = vld [vmem:[%s3 + $0x34] sm:$0xf]
      %v727 = vld [vmem:[%s3 + $0x38] sm:$0xf]
      %v728 = vld [vmem:[%s3 + $0x3c] sm:$0xf]
      %v729 = vld [vmem:[%s3 + $0x40] sm:$0xf]
      %v730 = vld [vmem:[%s3 + $0x44] sm:$0xf]
      %v731 = vld [vmem:[%s3 + $0x48] sm:$0xf]
      %v732 = vld [vmem:[%s3 + $0x4c] sm:$0xf]
      %v733 = vld [vmem:[%s3 + $0x50] sm:$0xf]
      %v734 = vld [vmem:[%s3 + $0x54] sm:$0xf]
      %v735 = vld [vmem:[%s3 + $0x58] sm:$0xf]
      %v736 = vld [vmem:[%s3 + $0x5c] sm:$0xf]
      %v737 = vld [vmem:[%s3 + $0x60] sm:$0xf]
      %v738 = vld [vmem:[%s3 + $0x64] sm:$0xf]
      %v739 = vld [vmem:[%s3 + $0x68] sm:$0xf]
      %v740 = vld [vmem:[%s3 + $0x6c] sm:$0xf]
      %v741 = vld [vmem:[%s3 + $0x70] sm:$0xf]
      %v742 = vld [vmem:[%s3 + $0x74] sm:$0xf]
      %v743 = vld [vmem:[%s3 + $0x78] sm:$0xf]
      %v744 = vld [vmem:[%s3 + $0x7c] sm:$0xf]
      %v746 = vlaneseq
      %v747 = vshrl.u32 %v746, 7
      %v748 = vsub.s32 0, %v747
      %v749 = vrot.slane %v357, %v748
      %v783 = vunpack.c.l.b16 %v713
      %v784 = vunpack.c.l.b16 %v714
      %v785 = vunpack.c.l.b16 %v715
      %v786 = vunpack.c.l.b16 %v716
      %v787 = vunpack.c.l.b16 %v717
      %v788 = vunpack.c.l.b16 %v718
      %v789 = vunpack.c.l.b16 %v719
      %v790 = vunpack.c.l.b16 %v720
      %v791 = vunpack.c.l.b16 %v721
      %v792 = vunpack.c.l.b16 %v722
      %v793 = vunpack.c.l.b16 %v723
      %v794 = vunpack.c.l.b16 %v724
      %v795 = vunpack.c.l.b16 %v725
      %v796 = vunpack.c.l.b16 %v726
      %v797 = vunpack.c.l.b16 %v727
      %v798 = vunpack.c.l.b16 %v728
      %v799 = vunpack.c.l.b16 %v729
      %v800 = vunpack.c.l.b16 %v730
      %v801 = vunpack.c.l.b16 %v731
      %v802 = vunpack.c.l.b16 %v732
      %v803 = vunpack.c.l.b16 %v733
      %v804 = vunpack.c.l.b16 %v734
      %v805 = vunpack.c.l.b16 %v735
      %v806 = vunpack.c.l.b16 %v736
      %v807 = vunpack.c.l.b16 %v737
      %v808 = vunpack.c.l.b16 %v738
      %v809 = vunpack.c.l.b16 %v739
      %v810 = vunpack.c.l.b16 %v740
      %v811 = vunpack.c.l.b16 %v741
      %v812 = vunpack.c.l.b16 %v742
      %v813 = vunpack.c.l.b16 %v743
      %v814 = vunpack.c.l.b16 %v744
      %v815 = vpack.c.b16 %v784, %v783
      %v816 = vpack.c.b16 %v786, %v785
      %v817 = vpack.c.b16 %v788, %v787
      %v818 = vpack.c.b16 %v790, %v789
      %v819 = vpack.c.b16 %v792, %v791
      %v820 = vpack.c.b16 %v794, %v793
      %v821 = vpack.c.b16 %v796, %v795
      %v822 = vpack.c.b16 %v798, %v797
      %v823 = vpack.c.b16 %v800, %v799
      %v824 = vpack.c.b16 %v802, %v801
      %v825 = vpack.c.b16 %v804, %v803
      %v826 = vpack.c.b16 %v806, %v805
      %v827 = vpack.c.b16 %v808, %v807
      %v828 = vpack.c.b16 %v810, %v809
      %v829 = vpack.c.b16 %v812, %v811
      %v830 = vpack.c.b16 %v814, %v813
      %847 = vmatprep.subr.bf16.mxu0 0
      %848 = vmatpush1.bf16.msra.mxu0 %v815
      %849 = vmatprep.subr.bf16.mxu0 0
      %850 = vmatpush1.bf16.msra.mxu0 %v816
      %851 = vmatprep.subr.bf16.mxu0 0
      %852 = vmatpush1.bf16.msra.mxu0 %v817
      %853 = vmatprep.subr.bf16.mxu0 0
      %854 = vmatpush1.bf16.msra.mxu0 %v818
      %855 = vmatprep.subr.bf16.mxu0 0
      %856 = vmatpush1.bf16.msra.mxu0 %v819
      %857 = vmatprep.subr.bf16.mxu0 0
      %858 = vmatpush1.bf16.msra.mxu0 %v820
      %859 = vmatprep.subr.bf16.mxu0 0
      %860 = vmatpush1.bf16.msra.mxu0 %v821
      %861 = vmatprep.subr.bf16.mxu0 0
      %862 = vmatpush1.bf16.msra.mxu0 %v822
      %863 = vmatprep.subr.bf16.mxu0 0
      %864 = vmatpush1.bf16.msra.mxu0 %v823
      %865 = vmatprep.subr.bf16.mxu0 0
      %866 = vmatpush1.bf16.msra.mxu0 %v824
      %867 = vmatprep.subr.bf16.mxu0 0
      %868 = vmatpush1.bf16.msra.mxu0 %v825
      %869 = vmatprep.subr.bf16.mxu0 0
      %870 = vmatpush1.bf16.msra.mxu0 %v826
      %871 = vmatprep.subr.bf16.mxu0 0
      %872 = vmatpush1.bf16.msra.mxu0 %v827
      %873 = vmatprep.subr.bf16.mxu0 0
      %874 = vmatpush1.bf16.msra.mxu0 %v828
      %875 = vmatprep.subr.bf16.mxu0 0
      %876 = vmatpush1.bf16.msra.mxu0 %v829
      %877 = vmatprep.subr.bf16.mxu0 0
      %878 = vmatpush1.bf16.msra.mxu0 %v830
      %879 = vmatprep.mubr.bf16.mxu0 %v546
      %880 = vmatmul.mubr.bf16.gmra.mrb[0].mxu0 %v545
      %v881 = vpop.f32.mrb[0].mxu0
      %v882 = vadd.f32 %v749, %v881
      %v883 = vpop.f32.mrb[0].mxu0
      %v884 = vpop.f32.mrb[0].mxu0
      %v885 = vadd.f32 %v749, %v884
      %v886 = vpop.f32.mrb[0].mxu0
      %887 = vmatprep.mubr.bf16.mxu0 %v548
      %888 = vmatmul.mubr.bf16.gmra.mrb[0].mxu0 %v547
      %v889 = vpop.f32.mrb[0].mxu0
      %v890 = vadd.f32 %v749, %v889
      %v891 = vpop.f32.mrb[0].mxu0
      %v892 = vpop.f32.mrb[0].mxu0
      %v893 = vadd.f32 %v749, %v892
      %v894 = vpop.f32.mrb[0].mxu0
      %895 = vmatprep.mubr.bf16.mxu0 %v550
      %896 = vmatmul.mubr.bf16.gmra.mrb[0].mxu0 %v549
      %v897 = vpop.f32.mrb[0].mxu0
      %v898 = vadd.f32 %v749, %v897
      %v899 = vpop.f32.mrb[0].mxu0
      %v900 = vpop.f32.mrb[0].mxu0
      %v901 = vadd.f32 %v749, %v900
      %v902 = vpop.f32.mrb[0].mxu0
      %903 = vmatprep.mubr.bf16.mxu0 %v552
      %904 = vmatmul.mubr.bf16.gmra.mrb[0].mxu0 %v551
      %v905 = vpop.f32.mrb[0].mxu0
      %v906 = vadd.f32 %v749, %v905
      %v907 = vpop.f32.mrb[0].mxu0
      %v908 = vpop.f32.mrb[0].mxu0
      %v909 = vadd.f32 %v749, %v908
      %v910 = vpop.f32.mrb[0].mxu0
      %911 = vdwg.mxu0
      %912 = vmatprep.subr.bf16.mxu0 0
      %913 = vmatpush1.bf16.msra.mxu0 %v815
      %914 = vmatprep.subr.bf16.mxu0 0
      %915 = vmatpush1.bf16.msra.mxu0 %v816
      %916 = vmatprep.subr.bf16.mxu0 0
      %917 = vmatpush1.bf16.msra.mxu0 %v817
      %918 = vmatprep.subr.bf16.mxu0 0
      %919 = vmatpush1.bf16.msra.mxu0 %v818
      %920 = vmatprep.subr.bf16.mxu0 0
      %921 = vmatpush1.bf16.msra.mxu0 %v819
      %922 = vmatprep.subr.bf16.mxu0 0
      %923 = vmatpush1.bf16.msra.mxu0 %v820
      %924 = vmatprep.subr.bf16.mxu0 0
      %925 = vmatpush1.bf16.msra.mxu0 %v821
      %926 = vmatprep.subr.bf16.mxu0 0
      %927 = vmatpush1.bf16.msra.mxu0 %v822
      %928 = vmatprep.subr.bf16.mxu0 0
      %929 = vmatpush1.bf16.msra.mxu0 %v823
      %930 = vmatprep.subr.bf16.mxu0 0
      %931 = vmatpush1.bf16.msra.mxu0 %v824
      %932 = vmatprep.subr.bf16.mxu0 0
      %933 = vmatpush1.bf16.msra.mxu0 %v825
      %934 = vmatprep.subr.bf16.mxu0 0
      %935 = vmatpush1.bf16.msra.mxu0 %v826
      %936 = vmatprep.subr.bf16.mxu0 0
      %937 = vmatpush1.bf16.msra.mxu0 %v827
      %938 = vmatprep.subr.bf16.mxu0 0
      %939 = vmatpush1.bf16.msra.mxu0 %v828
      %940 = vmatprep.subr.bf16.mxu0 0
      %941 = vmatpush1.bf16.msra.mxu0 %v829
      %942 = vmatprep.subr.bf16.mxu0 0
      %943 = vmatpush1.bf16.msra.mxu0 %v830
      %944 = vmatprep.mubr.bf16.mxu0 %v706
      %945 = vmatmul.mubr.bf16.gmra.mrb[0].mxu0 %v705
      %v946 = vpop.f32.mrb[0].mxu0
      %v947 = vadd.f32 %v749, %v946
      %v948 = vpop.f32.mrb[0].mxu0
      %v949 = vpop.f32.mrb[0].mxu0
      %v950 = vadd.f32 %v749, %v949
      %v951 = vpop.f32.mrb[0].mxu0
      %952 = vmatprep.mubr.bf16.mxu0 %v708
      %953 = vmatmul.mubr.bf16.gmra.mrb[0].mxu0 %v707
      %v954 = vpop.f32.mrb[0].mxu0
      %v955 = vadd.f32 %v749, %v954
      %v956 = vpop.f32.mrb[0].mxu0
      %v957 = vpop.f32.mrb[0].mxu0
      %v958 = vadd.f32 %v749, %v957
      %v959 = vpop.f32.mrb[0].mxu0
      %960 = vmatprep.mubr.bf16.mxu0 %v710
      %961 = vmatmul.mubr.bf16.gmra.mrb[0].mxu0 %v709
      %v962 = vpop.f32.mrb[0].mxu0
      %v963 = vadd.f32 %v749, %v962
      %v964 = vpop.f32.mrb[0].mxu0
      %v965 = vpop.f32.mrb[0].mxu0
      %v966 = vadd.f32 %v749, %v965
      %v967 = vpop.f32.mrb[0].mxu0
      %968 = vmatprep.mubr.bf16.mxu0 %v712
      %969 = vmatmul.mubr.bf16.gmra.mrb[0].mxu0 %v711
      %v970 = vpop.f32.mrb[0].mxu0
      %v971 = vadd.f32 %v749, %v970
      %v972 = vpop.f32.mrb[0].mxu0
      %v973 = vpop.f32.mrb[0].mxu0
      %v974 = vadd.f32 %v749, %v973
      %v975 = vpop.f32.mrb[0].mxu0
      %976 = vdwg.mxu0
      %v977 = vtanh.pop %v882
      %v978 = vtanh.pop %v885
      %v979 = vtanh.pop %v890
      %v980 = vtanh.pop %v893
      %v981 = vtanh.pop %v898
      %v982 = vtanh.pop %v901
      %v983 = vtanh.pop %v906
      %v984 = vtanh.pop %v909
      %v985 = vpack.c.bf16 %v978, %v977
      %v986 = vpack.c.bf16 %v980, %v979
      %v987 = vpack.c.bf16 %v982, %v981
      %v988 = vpack.c.bf16 %v984, %v983
      %v989 = vtanh.pop %v947
      %v990 = vtanh.pop %v950
      %v991 = vtanh.pop %v955
      %v992 = vtanh.pop %v958
      %v993 = vtanh.pop %v963
      %v994 = vtanh.pop %v966
      %v995 = vtanh.pop %v971
      %v996 = vtanh.pop %v974
      %v997 = vpack.c.bf16 %v990, %v989
      %v998 = vpack.c.bf16 %v992, %v991
      %v999 = vpack.c.bf16 %v994, %v993
      %v1000 = vpack.c.bf16 %v996, %v995
      %v1001 = vld [vmem:[%s5] sm:$0xf]
      %v1002 = vld [vmem:[%s5 + $0x4] sm:$0xf]
      %v1003 = vld [vmem:[%s5 + $0x8] sm:$0xf]
      %v1004 = vld [vmem:[%s5 + $0xc] sm:$0xf]
      %v1005 = vld [vmem:[%s5 + $0x10] sm:$0xf]
      %v1006 = vld [vmem:[%s5 + $0x14] sm:$0xf]
      %v1007 = vld [vmem:[%s5 + $0x18] sm:$0xf]
      %v1008 = vld [vmem:[%s5 + $0x1c] sm:$0xf]
      %v1009 = vld [vmem:[%s5 + $0x20] sm:$0xf]
      %v1010 = vld [vmem:[%s5 + $0x24] sm:$0xf]
      %v1011 = vld [vmem:[%s5 + $0x28] sm:$0xf]
      %v1012 = vld [vmem:[%s5 + $0x2c] sm:$0xf]
      %v1013 = vld [vmem:[%s5 + $0x30] sm:$0xf]
      %v1014 = vld [vmem:[%s5 + $0x34] sm:$0xf]
      %v1015 = vld [vmem:[%s5 + $0x38] sm:$0xf]
      %v1016 = vld [vmem:[%s5 + $0x3c] sm:$0xf]
      %v1018 = vlaneseq
      %v1019 = vshrl.u32 %v1018, 7
      %v1020 = vsub.s32 0, %v1019
      %v1021 = vrot.slane %v358, %v1020
      %v1039 = vunpack.c.l.b16 %v1001
      %v1040 = vunpack.c.l.b16 %v1002
      %v1041 = vunpack.c.l.b16 %v1003
      %v1042 = vunpack.c.l.b16 %v1004
      %v1043 = vunpack.c.l.b16 %v1005
      %v1044 = vunpack.c.l.b16 %v1006
      %v1045 = vunpack.c.l.b16 %v1007
      %v1046 = vunpack.c.l.b16 %v1008
      %v1047 = vunpack.c.l.b16 %v1009
      %v1048 = vunpack.c.l.b16 %v1010
      %v1049 = vunpack.c.l.b16 %v1011
      %v1050 = vunpack.c.l.b16 %v1012
      %v1051 = vunpack.c.l.b16 %v1013
      %v1052 = vunpack.c.l.b16 %v1014
      %v1053 = vunpack.c.l.b16 %v1015
      %v1054 = vunpack.c.l.b16 %v1016
      %v1055 = vpack.c.b16 %v1040, %v1039
      %v1056 = vpack.c.b16 %v1042, %v1041
      %v1057 = vpack.c.b16 %v1044, %v1043
      %v1058 = vpack.c.b16 %v1046, %v1045
      %v1059 = vpack.c.b16 %v1048, %v1047
      %v1060 = vpack.c.b16 %v1050, %v1049
      %v1061 = vpack.c.b16 %v1052, %v1051
      %v1062 = vpack.c.b16 %v1054, %v1053
      %1071 = vmatprep.subr.bf16.mxu0 0
      %1072 = vmatpush1.bf16.msra.mxu0 %v1055
      %1073 = vmatprep.subr.bf16.mxu0 0
      %1074 = vmatpush1.bf16.msra.mxu0 %v1056
      %1075 = vmatprep.subr.bf16.mxu0 0
      %1076 = vmatpush1.bf16.msra.mxu0 %v1057
      %1077 = vmatprep.subr.bf16.mxu0 0
      %1078 = vmatpush1.bf16.msra.mxu0 %v1058
      %1079 = vmatprep.subr.bf16.mxu0 0
      %1080 = vmatpush1.bf16.msra.mxu0 %v1059
      %1081 = vmatprep.subr.bf16.mxu0 0
      %1082 = vmatpush1.bf16.msra.mxu0 %v1060
      %1083 = vmatprep.subr.bf16.mxu0 0
      %1084 = vmatpush1.bf16.msra.mxu0 %v1061
      %1085 = vmatprep.subr.bf16.mxu0 0
      %1086 = vmatpush1.bf16.msra.mxu0 %v1062
      %1087 = vmatprep.subr.bf16.mxu0 0
      %1088 = vmatpush1.bf16.msra.mxu0 0
      %1089 = vmatprep.subr.bf16.mxu0 0
      %1090 = vmatpush1.bf16.msra.mxu0 0
      %1091 = vmatprep.subr.bf16.mxu0 0
      %1092 = vmatpush1.bf16.msra.mxu0 0
      %1093 = vmatprep.subr.bf16.mxu0 0
      %1094 = vmatpush1.bf16.msra.mxu0 0
      %1095 = vmatprep.subr.bf16.mxu0 0
      %1096 = vmatpush1.bf16.msra.mxu0 0
      %1097 = vmatprep.subr.bf16.mxu0 0
      %1098 = vmatpush1.bf16.msra.mxu0 0
      %1099 = vmatprep.subr.bf16.mxu0 0
      %1100 = vmatpush1.bf16.msra.mxu0 0
      %1101 = vmatprep.subr.bf16.mxu0 0
      %1102 = vmatpush1.bf16.msra.mxu0 0
      %1103 = vmatprep.mubr.bf16.mxu0 0
      %1104 = vmatmul.mubr.bf16.gmra.mrb[0].mxu0 %v985
      %v1105 = vpop.f32.mrb[0].mxu0
      %v1106 = vadd.f32 %v1021, %v1105
      %v1107 = vpop.f32.mrb[0].mxu0
      %v1108 = vpop.f32.mrb[0].mxu0
      %v1109 = vadd.f32 %v1021, %v1108
      %v1110 = vpop.f32.mrb[0].mxu0
      %1111 = vmatprep.mubr.bf16.mxu0 0
      %1112 = vmatmul.mubr.bf16.gmra.mrb[0].mxu0 %v986
      %v1113 = vpop.f32.mrb[0].mxu0
      %v1114 = vadd.f32 %v1021, %v1113
      %v1115 = vpop.f32.mrb[0].mxu0
      %v1116 = vpop.f32.mrb[0].mxu0
      %v1117 = vadd.f32 %v1021, %v1116
      %v1118 = vpop.f32.mrb[0].mxu0
      %1119 = vmatprep.mubr.bf16.mxu0 0
      %1120 = vmatmul.mubr.bf16.gmra.mrb[0].mxu0 %v987
      %v1121 = vpop.f32.mrb[0].mxu0
      %v1122 = vadd.f32 %v1021, %v1121
      %v1123 = vpop.f32.mrb[0].mxu0
      %v1124 = vpop.f32.mrb[0].mxu0
      %v1125 = vadd.f32 %v1021, %v1124
      %v1126 = vpop.f32.mrb[0].mxu0
      %1127 = vmatprep.mubr.bf16.mxu0 0
      %1128 = vmatmul.mubr.bf16.gmra.mrb[0].mxu0 %v988
      %v1129 = vpop.f32.mrb[0].mxu0
      %v1130 = vadd.f32 %v1021, %v1129
      %v1131 = vpop.f32.mrb[0].mxu0
      %v1132 = vpop.f32.mrb[0].mxu0
      %v1133 = vadd.f32 %v1021, %v1132
      %v1134 = vpop.f32.mrb[0].mxu0
      %1135 = vdwg.mxu0
      %1136 = vmatprep.subr.bf16.mxu0 0
      %1137 = vmatpush1.bf16.msra.mxu0 %v1055
      %1138 = vmatprep.subr.bf16.mxu0 0
      %1139 = vmatpush1.bf16.msra.mxu0 %v1056
      %1140 = vmatprep.subr.bf16.mxu0 0
      %1141 = vmatpush1.bf16.msra.mxu0 %v1057
      %1142 = vmatprep.subr.bf16.mxu0 0
      %1143 = vmatpush1.bf16.msra.mxu0 %v1058
      %1144 = vmatprep.subr.bf16.mxu0 0
      %1145 = vmatpush1.bf16.msra.mxu0 %v1059
      %1146 = vmatprep.subr.bf16.mxu0 0
      %1147 = vmatpush1.bf16.msra.mxu0 %v1060
      %1148 = vmatprep.subr.bf16.mxu0 0
      %1149 = vmatpush1.bf16.msra.mxu0 %v1061
      %1150 = vmatprep.subr.bf16.mxu0 0
      %1151 = vmatpush1.bf16.msra.mxu0 %v1062
      %1152 = vmatprep.subr.bf16.mxu0 0
      %1153 = vmatpush1.bf16.msra.mxu0 0
      %1154 = vmatprep.subr.bf16.mxu0 0
      %1155 = vmatpush1.bf16.msra.mxu0 0
      %1156 = vmatprep.subr.bf16.mxu0 0
      %1157 = vmatpush1.bf16.msra.mxu0 0
      %1158 = vmatprep.subr.bf16.mxu0 0
      %1159 = vmatpush1.bf16.msra.mxu0 0
      %1160 = vmatprep.subr.bf16.mxu0 0
      %1161 = vmatpush1.bf16.msra.mxu0 0
      %1162 = vmatprep.subr.bf16.mxu0 0
      %1163 = vmatpush1.bf16.msra.mxu0 0
      %1164 = vmatprep.subr.bf16.mxu0 0
      %1165 = vmatpush1.bf16.msra.mxu0 0
      %1166 = vmatprep.subr.bf16.mxu0 0
      %1167 = vmatpush1.bf16.msra.mxu0 0
      %1168 = vmatprep.mubr.bf16.mxu0 0
      %1169 = vmatmul.mubr.bf16.gmra.mrb[0].mxu0 %v997
      %v1170 = vpop.f32.mrb[0].mxu0
      %v1171 = vadd.f32 %v1021, %v1170
      %v1172 = vpop.f32.mrb[0].mxu0
      %v1173 = vpop.f32.mrb[0].mxu0
      %v1174 = vadd.f32 %v1021, %v1173
      %v1175 = vpop.f32.mrb[0].mxu0
      %1176 = vmatprep.mubr.bf16.mxu0 0
      %1177 = vmatmul.mubr.bf16.gmra.mrb[0].mxu0 %v998
      %v1178 = vpop.f32.mrb[0].mxu0
      %v1179 = vadd.f32 %v1021, %v1178
      %v1180 = vpop.f32.mrb[0].mxu0
      %v1181 = vpop.f32.mrb[0].mxu0
      %v1182 = vadd.f32 %v1021, %v1181
      %v1183 = vpop.f32.mrb[0].mxu0
      %1184 = vmatprep.mubr.bf16.mxu0 0
      %1185 = vmatmul.mubr.bf16.gmra.mrb[0].mxu0 %v999
      %v1186 = vpop.f32.mrb[0].mxu0
      %v1187 = vadd.f32 %v1021, %v1186
      %v1188 = vpop.f32.mrb[0].mxu0
      %v1189 = vpop.f32.mrb[0].mxu0
      %v1190 = vadd.f32 %v1021, %v1189
      %v1191 = vpop.f32.mrb[0].mxu0
      %1192 = vmatprep.mubr.bf16.mxu0 0
      %1193 = vmatmul.mubr.bf16.gmra.mrb[0].mxu0 %v1000
      %v1194 = vpop.f32.mrb[0].mxu0
      %v1195 = vadd.f32 %v1021, %v1194
      %v1196 = vpop.f32.mrb[0].mxu0
      %v1197 = vpop.f32.mrb[0].mxu0
      %v1198 = vadd.f32 %v1021, %v1197
      %v1199 = vpop.f32.mrb[0].mxu0
      %1200 = vdwg.mxu0
      %v1201 = vtanh.pop %v1106
      %v1202 = vtanh.pop %v1109
      %v1203 = vtanh.pop %v1114
      %v1204 = vtanh.pop %v1117
      %v1205 = vtanh.pop %v1122
      %v1206 = vtanh.pop %v1125
      %v1207 = vtanh.pop %v1130
      %v1208 = vtanh.pop %v1133
      %v1209 = vpack.c.bf16 %v1202, %v1201
      %v1210 = vpack.c.bf16 %v1204, %v1203
      %v1211 = vpack.c.bf16 %v1206, %v1205
      %v1212 = vpack.c.bf16 %v1208, %v1207
      %v1213 = vtanh.pop %v1171
      %v1214 = vtanh.pop %v1174
      %v1215 = vtanh.pop %v1179
      %v1216 = vtanh.pop %v1182
      %v1217 = vtanh.pop %v1187
      %v1218 = vtanh.pop %v1190
      %v1219 = vtanh.pop %v1195
      %v1220 = vtanh.pop %v1198
      %v1221 = vpack.c.bf16 %v1214, %v1213
      %v1222 = vpack.c.bf16 %v1216, %v1215
      %v1223 = vpack.c.bf16 %v1218, %v1217
      %v1224 = vpack.c.bf16 %v1220, %v1219
      %v1225 = vld [vmem:[%s7] sm:$0xf]
      %v1226 = vld [vmem:[%s7 + $0x4] sm:$0xf]
      %v1227 = vld [vmem:[%s7 + $0x8] sm:$0xf]
      %v1228 = vld [vmem:[%s7 + $0xc] sm:$0xf]
      %v1229 = vld [vmem:[%s7 + $0x10] sm:$0xf]
      %v1230 = vld [vmem:[%s7 + $0x14] sm:$0xf]
      %v1231 = vld [vmem:[%s7 + $0x18] sm:$0xf]
      %v1232 = vld [vmem:[%s7 + $0x1c] sm:$0xf]
      %v1233 = vld [vmem:[%s7 + $0x20] sm:$0xf]
      %v1234 = vld [vmem:[%s7 + $0x24] sm:$0xf]
      %v1235 = vld [vmem:[%s7 + $0x28] sm:$0xf]
      %v1236 = vld [vmem:[%s7 + $0x2c] sm:$0xf]
      %v1237 = vld [vmem:[%s7 + $0x30] sm:$0xf]
      %v1238 = vld [vmem:[%s7 + $0x34] sm:$0xf]
      %v1239 = vld [vmem:[%s7 + $0x38] sm:$0xf]
      %v1240 = vld [vmem:[%s7 + $0x3c] sm:$0xf]
      %v1242 = vlaneseq
      %v1243 = vshrl.u32 %v1242, 7
      %v1244 = vsub.s32 0, %v1243
      %v1245 = vrot.slane %v359, %v1244
      %v1263 = vunpack.c.l.b16 %v1225
      %v1264 = vunpack.c.l.b16 %v1226
      %v1265 = vunpack.c.l.b16 %v1227
      %v1266 = vunpack.c.l.b16 %v1228
      %v1267 = vunpack.c.l.b16 %v1229
      %v1268 = vunpack.c.l.b16 %v1230
      %v1269 = vunpack.c.l.b16 %v1231
      %v1270 = vunpack.c.l.b16 %v1232
      %v1271 = vunpack.c.l.b16 %v1233
      %v1272 = vunpack.c.l.b16 %v1234
      %v1273 = vunpack.c.l.b16 %v1235
      %v1274 = vunpack.c.l.b16 %v1236
      %v1275 = vunpack.c.l.b16 %v1237
      %v1276 = vunpack.c.l.b16 %v1238
      %v1277 = vunpack.c.l.b16 %v1239
      %v1278 = vunpack.c.l.b16 %v1240
      %v1279 = vpack.c.b16 %v1264, %v1263
      %v1280 = vpack.c.b16 %v1266, %v1265
      %v1281 = vpack.c.b16 %v1268, %v1267
      %v1282 = vpack.c.b16 %v1270, %v1269
      %v1283 = vpack.c.b16 %v1272, %v1271
      %v1284 = vpack.c.b16 %v1274, %v1273
      %v1285 = vpack.c.b16 %v1276, %v1275
      %v1286 = vpack.c.b16 %v1278, %v1277
      %1295 = vmatprep.subr.bf16.mxu0 0
      %1296 = vmatpush1.bf16.msra.mxu0 %v1279
      %1297 = vmatprep.subr.bf16.mxu0 0
      %1298 = vmatpush1.bf16.msra.mxu0 %v1280
      %1299 = vmatprep.subr.bf16.mxu0 0
      %1300 = vmatpush1.bf16.msra.mxu0 %v1281
      %1301 = vmatprep.subr.bf16.mxu0 0
      %1302 = vmatpush1.bf16.msra.mxu0 %v1282
      %1303 = vmatprep.subr.bf16.mxu0 0
      %1304 = vmatpush1.bf16.msra.mxu0 %v1283
      %1305 = vmatprep.subr.bf16.mxu0 0
      %1306 = vmatpush1.bf16.msra.mxu0 %v1284
      %1307 = vmatprep.subr.bf16.mxu0 0
      %1308 = vmatpush1.bf16.msra.mxu0 %v1285
      %1309 = vmatprep.subr.bf16.mxu0 0
      %1310 = vmatpush1.bf16.msra.mxu0 %v1286
      %1311 = vmatprep.subr.bf16.mxu0 0
      %1312 = vmatpush1.bf16.msra.mxu0 0
      %1313 = vmatprep.subr.bf16.mxu0 0
      %1314 = vmatpush1.bf16.msra.mxu0 0
      %1315 = vmatprep.subr.bf16.mxu0 0
      %1316 = vmatpush1.bf16.msra.mxu0 0
      %1317 = vmatprep.subr.bf16.mxu0 0
      %1318 = vmatpush1.bf16.msra.mxu0 0
      %1319 = vmatprep.subr.bf16.mxu0 0
      %1320 = vmatpush1.bf16.msra.mxu0 0
      %1321 = vmatprep.subr.bf16.mxu0 0
      %1322 = vmatpush1.bf16.msra.mxu0 0
      %1323 = vmatprep.subr.bf16.mxu0 0
      %1324 = vmatpush1.bf16.msra.mxu0 0
      %1325 = vmatprep.subr.bf16.mxu0 0
      %1326 = vmatpush1.bf16.msra.mxu0 0
      %1327 = vmatprep.mubr.bf16.mxu0 0
      %1328 = vmatmul.mubr.bf16.gmra.mrb[0].mxu0 %v1209
      %v1329 = vpop.f32.mrb[0].mxu0
      %v1330 = vadd.f32 %v1245, %v1329
      %v1331 = vpop.f32.mrb[0].mxu0
      %v1332 = vpop.f32.mrb[0].mxu0
      %v1333 = vadd.f32 %v1245, %v1332
      %v1334 = vpop.f32.mrb[0].mxu0
      %1335 = vmatprep.mubr.bf16.mxu0 0
      %1336 = vmatmul.mubr.bf16.gmra.mrb[0].mxu0 %v1210
      %v1337 = vpop.f32.mrb[0].mxu0
      %v1338 = vadd.f32 %v1245, %v1337
      %v1339 = vpop.f32.mrb[0].mxu0
      %v1340 = vpop.f32.mrb[0].mxu0
      %v1341 = vadd.f32 %v1245, %v1340
      %v1342 = vpop.f32.mrb[0].mxu0
      %1343 = vmatprep.mubr.bf16.mxu0 0
      %1344 = vmatmul.mubr.bf16.gmra.mrb[0].mxu0 %v1211
      %v1345 = vpop.f32.mrb[0].mxu0
      %v1346 = vadd.f32 %v1245, %v1345
      %v1347 = vpop.f32.mrb[0].mxu0
      %v1348 = vpop.f32.mrb[0].mxu0
      %v1349 = vadd.f32 %v1245, %v1348
      %v1350 = vpop.f32.mrb[0].mxu0
      %1351 = vmatprep.mubr.bf16.mxu0 0
      %1352 = vmatmul.mubr.bf16.gmra.mrb[0].mxu0 %v1212
      %v1353 = vpop.f32.mrb[0].mxu0
      %v1354 = vadd.f32 %v1245, %v1353
      %v1355 = vpop.f32.mrb[0].mxu0
      %v1356 = vpop.f32.mrb[0].mxu0
      %v1357 = vadd.f32 %v1245, %v1356
      %v1358 = vpop.f32.mrb[0].mxu0
      %1359 = vdwg.mxu0
      %1360 = vmatprep.subr.bf16.mxu0 0
      %1361 = vmatpush1.bf16.msra.mxu0 %v1279
      %1362 = vmatprep.subr.bf16.mxu0 0
      %1363 = vmatpush1.bf16.msra.mxu0 %v1280
      %1364 = vmatprep.subr.bf16.mxu0 0
      %1365 = vmatpush1.bf16.msra.mxu0 %v1281
      %1366 = vmatprep.subr.bf16.mxu0 0
      %1367 = vmatpush1.bf16.msra.mxu0 %v1282
      %1368 = vmatprep.subr.bf16.mxu0 0
      %1369 = vmatpush1.bf16.msra.mxu0 %v1283
      %1370 = vmatprep.subr.bf16.mxu0 0
      %1371 = vmatpush1.bf16.msra.mxu0 %v1284
      %1372 = vmatprep.subr.bf16.mxu0 0
      %1373 = vmatpush1.bf16.msra.mxu0 %v1285
      %1374 = vmatprep.subr.bf16.mxu0 0
      %1375 = vmatpush1.bf16.msra.mxu0 %v1286
      %1376 = vmatprep.subr.bf16.mxu0 0
      %1377 = vmatpush1.bf16.msra.mxu0 0
      %1378 = vmatprep.subr.bf16.mxu0 0
      %1379 = vmatpush1.bf16.msra.mxu0 0
      %1380 = vmatprep.subr.bf16.mxu0 0
      %1381 = vmatpush1.bf16.msra.mxu0 0
      %1382 = vmatprep.subr.bf16.mxu0 0
      %1383 = vmatpush1.bf16.msra.mxu0 0
      %1384 = vmatprep.subr.bf16.mxu0 0
      %1385 = vmatpush1.bf16.msra.mxu0 0
      %1386 = vmatprep.subr.bf16.mxu0 0
      %1387 = vmatpush1.bf16.msra.mxu0 0
      %1388 = vmatprep.subr.bf16.mxu0 0
      %1389 = vmatpush1.bf16.msra.mxu0 0
      %1390 = vmatprep.subr.bf16.mxu0 0
      %1391 = vmatpush1.bf16.msra.mxu0 0
      %1392 = vmatprep.mubr.bf16.mxu0 0
      %1393 = vmatmul.mubr.bf16.gmra.mrb[0].mxu0 %v1221
      %v1394 = vpop.f32.mrb[0].mxu0
      %v1395 = vadd.f32 %v1245, %v1394
      %v1396 = vpop.f32.mrb[0].mxu0
      %v1397 = vpop.f32.mrb[0].mxu0
      %v1398 = vadd.f32 %v1245, %v1397
      %v1399 = vpop.f32.mrb[0].mxu0
      %1400 = vmatprep.mubr.bf16.mxu0 0
      %1401 = vmatmul.mubr.bf16.gmra.mrb[0].mxu0 %v1222
      %v1402 = vpop.f32.mrb[0].mxu0
      %v1403 = vadd.f32 %v1245, %v1402
      %v1404 = vpop.f32.mrb[0].mxu0
      %v1405 = vpop.f32.mrb[0].mxu0
      %v1406 = vadd.f32 %v1245, %v1405
      %v1407 = vpop.f32.mrb[0].mxu0
      %1408 = vmatprep.mubr.bf16.mxu0 0
      %1409 = vmatmul.mubr.bf16.gmra.mrb[0].mxu0 %v1223
      %v1410 = vpop.f32.mrb[0].mxu0
      %v1411 = vadd.f32 %v1245, %v1410
      %v1412 = vpop.f32.mrb[0].mxu0
      %v1413 = vpop.f32.mrb[0].mxu0
      %v1414 = vadd.f32 %v1245, %v1413
      %v1415 = vpop.f32.mrb[0].mxu0
      %1416 = vmatprep.mubr.bf16.mxu0 0
      %1417 = vmatmul.mubr.bf16.gmra.mrb[0].mxu0 %v1224
      %v1418 = vpop.f32.mrb[0].mxu0
      %v1419 = vadd.f32 %v1245, %v1418
      %v1420 = vpop.f32.mrb[0].mxu0
      %v1421 = vpop.f32.mrb[0].mxu0
      %v1422 = vadd.f32 %v1245, %v1421
      %v1423 = vpop.f32.mrb[0].mxu0
      %1424 = vdwg.mxu0
      %vm1425 = vcmask 15360
      %1426 = vst.msk [vmem:[%s334] sm:$0xff] %vm1425, %v1330
      %1427 = vst.msk [vmem:[%s334 + $0x8] sm:$0xff] %vm1425, %v1333
      %1428 = vst.msk [vmem:[%s334 + $0x10] sm:$0xff] %vm1425, %v1338
      %1429 = vst.msk [vmem:[%s334 + $0x18] sm:$0xff] %vm1425, %v1341
      %1430 = vst.msk [vmem:[%s334 + $0x20] sm:$0xff] %vm1425, %v1346
      %1431 = vst.msk [vmem:[%s334 + $0x28] sm:$0xff] %vm1425, %v1349
      %1432 = vst.msk [vmem:[%s334 + $0x30] sm:$0xff] %vm1425, %v1354
      %1433 = vst.msk [vmem:[%s334 + $0x38] sm:$0xff] %vm1425, %v1357
      %1434 = vst.msk [vmem:[%s334 + $0x40] sm:$0xff] %vm1425, %v1395
      %1435 = vst.msk [vmem:[%s334 + $0x48] sm:$0xff] %vm1425, %v1398
      %1436 = vst.msk [vmem:[%s334 + $0x50] sm:$0xff] %vm1425, %v1403
      %1437 = vst.msk [vmem:[%s334 + $0x58] sm:$0xff] %vm1425, %v1406
      %1438 = vst.msk [vmem:[%s334 + $0x60] sm:$0xff] %vm1425, %v1411
      %1439 = vst.msk [vmem:[%s334 + $0x68] sm:$0xff] %vm1425, %v1414
      %1440 = vst.msk [vmem:[%s334 + $0x70] sm:$0xff] %vm1425, %v1419
      %1441 = vst.msk [vmem:[%s334 + $0x78] sm:$0xff] %vm1425, %v1422
      %s1442 = smul.u32 16, %s20
      %p1443 = scmp.lt.s32.totalorder %s1442, 31
      %s1444 = scalar_select %p1443, %s1442, 31
      %s1445 = smul.addr %s1444, 8
      %s1446 = scalar_lea.vmem %s9, %s1445
      // Predicated region
      $region57: #{odefunc_forward.1} parent=55 // pred_check
        %p1447 = pneg %p232
      $region58: #{odefunc_forward.1} parent=55 // pred_check_branch
        %1449 = sbr.rel (%p1447) target = $region60
      $region59: #{odefunc_forward.1} parent=55 // pred_region
        %s1450 = smul.u32 16, %s20
      $region60: #{odefunc_forward.1} parent=55 // pred_fallthru
        _
    $region56: #{odefunc_forward.1} parent=5 // pred_fallthru
      _
    %p1451 = scmp.le.s32.totalorder 2, %s15
    // Predicated region
    $region61: #{odefunc_forward.1} parent=5 // pred_check
      %p1452 = pneg %p1451
    $region62: #{odefunc_forward.1} parent=5 // pred_check_branch
      %1454 = sbr.rel (%p1452) target = $region64
    $region63: #{odefunc_forward.1} parent=5 // pred_region
      %s1455 = ssub.s32 %s15, 2
      // Predicated region
      $region65: #{odefunc_forward.1} parent=63 // pred_check
        %p1456 = pneg %p238
      $region66: #{odefunc_forward.1} parent=63 // pred_check_branch
        %1458 = sbr.rel (%p1456) target = $region68
      $region67: #{odefunc_forward.1} parent=63 // pred_region
        %s1459 = smul.u32 16, %s21
        %p1460 = scmp.lt.s32.totalorder %s1459, 31
        %s1461 = scalar_select %p1460, %s1459, 31
        %s1462 = smul.addr %s1461, 8
        %s1463 = scalar_lea.vmem %s9, %s1462
      $region68: #{odefunc_forward.1} parent=63 // pred_fallthru
        _
    $region64: #{odefunc_forward.1} parent=5 // pred_fallthru
      _
  $region6: #{odefunc_forward.1} parent=0 // loop_footer
    %s19 = sadd.s32 1, %s15
  $region7: #{odefunc_forward.1} parent=0 // loop_footer_branch
    %14 = sbr.rel target = $region3
  $region8: #{odefunc_forward.1} parent=0 // loop_exit
    _

</llo_original>
